<compile_context>
chip_gen: v7x
topology: tpu7x:2x2x1
jax: 0.10.0
libtpu: 0.0.40
codegen_flags: <defaults>
</compile_context>

<pallas_src>
import functools

import jax
import jax.numpy as jnp
from jax import lax
from jax.experimental import pallas as pl
from jax.experimental.pallas import tpu as pltpu


def _round_up(x, m):
    return ((x + m - 1) // m) * m


def _sigmoid(x):
    # One EUP tanh + VPU mul/add (instead of a possible exp + reciprocal pair).
    return 0.5 * jnp.tanh(0.5 * x) + 0.5


def _multiact_bce_kernel(x_ref, label_ref, out_ref, acc_ref, *,
                         num_classes, tile_n, strip, n_valid):
    """One grid step processes a (tile_n, 2C+1) slab of logits in sublane strips.

    Grid = (num_chunks ['parallel'], tiles_per_chunk ['arbitrary']).  Each chunk
    owns a persistent (strip, C) VMEM accumulator; the last inner step does the
    only cross-lane reduce and writes the chunk's partial sum (lane-broadcast)."""
    ci = pl.program_id(0)              # row chunk (megacore axis)
    si = pl.program_id(1)              # tile within chunk (reduction axis)
    n_steps = pl.num_programs(1)

    @pl.when(si == 0)
    def _():
        acc_ref[...] = jnp.zeros_like(acc_ref)

    C = num_classes
    n_strips = tile_n // strip
    tile_row0 = (ci * n_steps + si) * tile_n   # logical (unclamped) first row

    def strip_body(s, carry):
        r0 = pl.multiple_of(s * strip, strip)
        xs = x_ref[pl.ds(r0, strip), :].astype(jnp.float32)   # (strip, 2C+1)

        # --- multi activation (get_multi_act), column groups sliced in-kernel ---
        g = jnp.clip(xs[:, :C], -4.0, 10.0)
        pestim_g = jnp.exp(-jnp.exp(-g))                       # == 1/exp(exp(-g))
        n_logit = jnp.clip(xs[:, C:2 * C], -12.0, 12.0)
        pestim_n = _sigmoid(n_logit)
        gate = _sigmoid(xs[:, 2 * C:2 * C + 1])                # (strip, 1)
        # gate*pg + (1-gate)*pn  ==  pn + gate*(pg - pn)   (one mul instead of two)
        p = pestim_n + gate * (pestim_g - pestim_n)            # (strip, C)

        # --- one-hot BCE with a single log per element (log clamped at -100) ---
        labels = label_ref[pl.ds(r0, strip), :]                # (strip, 1) int32
        col = lax.broadcasted_iota(jnp.int32, p.shape, 1)
        q = jnp.where(col == labels, p, 1.0 - p)
        loss = -jnp.maximum(jnp.log(q), -100.0)

        # --- mask rows past the true batch size (ragged last block / overrun
        #     grid steps read unspecified data; this where also zeroes any NaN).
        #     Keep this AFTER the log so garbage data cannot leak through. ---
        row = (tile_row0 + r0
               + lax.broadcasted_iota(jnp.int32, (strip, 1), 0))
        loss = jnp.where(row < n_valid, loss, 0.0)

        acc_ref[...] += loss                                   # pure VPU adds
        return carry

    lax.fori_loop(0, n_strips, strip_body, 0,
                  unroll=min(4, max(1, n_strips)))

    @pl.when(si == n_steps - 1)
    def _():
        total = jnp.sum(acc_ref[...])                          # one XLU reduce / chunk
        out_ref[...] = jnp.full(out_ref.shape, total, dtype=jnp.float32)


def multi_activation_forward(cls_score, label, *, num_classes,
                             tile_n=1024, num_chunks=1):
    """JAX/Pallas equivalent of MultiActivation.forward with the default config.

    Args:
      cls_score: (N, 2*num_classes + 1) float32 or bfloat16 logits
                 [g-logits | n-logits | gate logit].
      label:     (N,) int labels in [0, num_classes] (num_classes == background).
      tile_n:    rows per grid step (rounded to the strip granularity).
      num_chunks: leading 'parallel' grid axis; set to 2 on v7x to use both
                 TensorCores, leave at 1 on v5e/v6e.
    Returns:
      dict with 'loss_cls' scalar (sum of elementwise BCE / N).
    """
    N, ch = cls_score.shape
    assert ch == 2 * num_classes + 1

    ch_pad = _round_up(ch, 128)
    c_pad = _round_up(num_classes, 128)
    itemsize = jnp.dtype(cls_score.dtype).itemsize

    # Strip size: full-width strip load stays within ~16 f32 vregs (no spill),
    # floored to 8 sublanes, capped at 32 rows.
    strip = max(8, min(32, ((16384 // ch_pad) // 8) * 8))

    # Round tile rows to the strip granularity; never (much) larger than N.
    tile_n = max(strip, min(tile_n, _round_up(N, strip)))
    tile_n = _round_up(tile_n, strip)
    tiles = pl.cdiv(N, tile_n)
    num_chunks = max(1, min(num_chunks, tiles))
    tiles_per_chunk = pl.cdiv(tiles, num_chunks)

    # No padding: the ragged last block (and any overrun chunk steps, clamped
    # below) are neutralized by the in-kernel row mask.
    label2d = label.astype(jnp.int32).reshape(N, 1)

    def _row_map(c, s):
        # Clamp so overrun steps (when tiles % num_chunks != 0) re-read the last
        # valid block instead of going out of bounds; they are fully row-masked.
        return (jnp.minimum(c * tiles_per_chunk + s, tiles - 1), 0)

    kernel = functools.partial(_multiact_bce_kernel,
                               num_classes=num_classes,
                               tile_n=tile_n,
                               strip=strip,
                               n_valid=N)

    cost = pl.CostEstimate(
        flops=12 * N * num_classes,
        transcendentals=4 * N * num_classes + N,
        bytes_accessed=N * ch * itemsize + N * 4 + num_chunks * 128 * 4,
    )

    # VMEM budget: double-buffered logits + lane-padded label block +
    # accumulator + output + headroom for per-strip intermediates/relayouts.
    # Cap at 56 MiB (v7x has only 64 MiB physical per TensorCore).
    vmem_bytes = (2 * tile_n * ch_pad * itemsize
                  + 2 * tile_n * 128 * 4
                  + strip * c_pad * 4
                  + 2 * 128 * 4
                  + (4 << 20))
    vmem_limit = int(min(56 << 20, max(vmem_bytes, 32 << 20)))

    out = pl.pallas_call(
        kernel,
        out_shape=jax.ShapeDtypeStruct((num_chunks, 1, 128), jnp.float32),
        grid_spec=pltpu.PrefetchScalarGridSpec(
            num_scalar_prefetch=0,
            grid=(num_chunks, tiles_per_chunk),
            in_specs=[
                pl.BlockSpec((tile_n, ch), _row_map),
                pl.BlockSpec((tile_n, 1), _row_map),
            ],
            out_specs=pl.BlockSpec((1, 1, 128), lambda c, s: (c, 0, 0)),
            scratch_shapes=[pltpu.VMEM((strip, num_classes), jnp.float32)],
        ),
        compiler_params=pltpu.CompilerParams(
            # TODO(synk): on v7x verify the chunk axis actually splits across
            # both TensorCores; if not, switch to pltpu.CORE_PARALLEL here.
            dimension_semantics=("parallel", "arbitrary"),
            vmem_limit_bytes=vmem_limit),
        cost_estimate=cost,
    )(cls_score, label2d)

    return {"loss_cls": jnp.sum(out[:, 0, 0]) / jnp.float32(N)}


def _reference_forward(cls_score, label, num_classes):
    """Pure-JAX reference mirroring the PyTorch code (for correctness check)."""
    N = cls_score.shape[0]
    x = cls_score.astype(jnp.float32)
    g = jnp.clip(x[:, :num_classes], -4.0, 10.0)
    pestim_g = 1.0 / jnp.exp(jnp.exp(-g))
    nn_ = jnp.clip(x[:, num_classes:2 * num_classes], -12.0, 12.0)
    pestim_n = jax.nn.sigmoid(nn_)
    gate = jax.nn.sigmoid(x[:, -1:])
    p = gate * pestim_g + (1.0 - gate) * pestim_n
    tgt = jax.nn.one_hot(label, num_classes + 1)[:, :num_classes]
    loss = -(tgt * jnp.maximum(jnp.log(p), -100.0)
             + (1.0 - tgt) * jnp.maximum(jnp.log(1.0 - p), -100.0))
    loss = jnp.where(jnp.isnan(loss) | jnp.isinf(loss), 0.0, loss)
    return jnp.sum(loss) / N


if __name__ == "__main__":
    num_classes = 200   # small synthetic C (module default is 1203); deliberately
                        # not a multiple of 128 to exercise unaligned in-kernel slices
    N = 500             # not a multiple of tile_n -> exercises the unpadded ragged
                        # last block + in-kernel row masking
    key = jax.random.PRNGKey(0)
    k1, k2 = jax.random.split(key)

    cls_score = (jax.random.normal(k1, (N, 2 * num_classes + 1),
                                   dtype=jnp.float32) * 2.0)
    # labels in [0, num_classes]; value == num_classes is background (all-zero target)
    label = jax.random.randint(k2, (N,), 0, num_classes + 1, dtype=jnp.int32)

    ref = _reference_forward(cls_score, label, num_classes)

    # Config A: multi-tile grid, ragged (masked) last block, 2-chunk parallel axis.
    out_a = multi_activation_forward(cls_score, label, num_classes=num_classes,
                                     tile_n=128, num_chunks=2)
    loss_a = jax.block_until_ready(out_a["loss_cls"])
    assert jnp.allclose(loss_a, ref, rtol=1e-4, atol=1e-5), (loss_a, ref)

    # Config B: default large tile (clamped to N), single chunk.
    out_b = multi_activation_forward(cls_score, label, num_classes=num_classes)
    loss_b = jax.block_until_ready(out_b["loss_cls"])
    assert jnp.allclose(loss_b, ref, rtol=1e-4, atol=1e-5), (loss_b, ref)

    # Config C: tiles (4) not divisible by num_chunks (3) -> clamped, fully masked
    # overrun grid steps (exercises the no-pad path end to end).
    out_c = multi_activation_forward(cls_score, label, num_classes=num_classes,
                                     tile_n=128, num_chunks=3)
    loss_c = jax.block_until_ready(out_c["loss_cls"])
    assert jnp.allclose(loss_c, ref, rtol=1e-4, atol=1e-5), (loss_c, ref)

    # Config D: bf16 logits (halved HBM bytes), math upcast to f32 per strip.
    cls_bf16 = cls_score.astype(jnp.bfloat16)
    ref_bf16 = _reference_forward(cls_bf16, label, num_classes)
    out_d = multi_activation_forward(cls_bf16, label, num_classes=num_classes,
                                     tile_n=256, num_chunks=1)
    loss_d = jax.block_until_ready(out_d["loss_cls"])
    assert jnp.allclose(loss_d, ref_bf16, rtol=1e-4, atol=1e-5), (loss_d, ref_bf16)

    print("KERNEL_OK")
</pallas_src>

<mosaic_0001>
module attributes {stable_mosaic.version = 11 : i64} {
  func.func @_multiact_bce_kernel(%arg0: i32, %arg1: i32, %arg2: memref<128x401xf32, #tpu.memory_space<vmem>>, %arg3: memref<128x1xi32, #tpu.memory_space<vmem>>, %arg4: memref<1x1x128xf32, #tpu.memory_space<vmem>>, %arg5: memref<32x200xf32, #tpu.memory_space<vmem>>) attributes {dimension_semantics = [#tpu.dimension_semantics<parallel>, #tpu.dimension_semantics<arbitrary>], iteration_bounds = array<i64: 2, 2>, scalar_prefetch = 0 : i64, scratch_operands = 1 : i64, tpu.core_type = #tpu.core_type<tc>, window_params = [{transform_indices = @transform_0, window_bounds = array<i64: 128, 401>}, {transform_indices = @transform_1, window_bounds = array<i64: 128, 1>}, {transform_indices = @transform_2, window_bounds = array<i64: 1, 1, 128>}]} {
    %c0_i32 = arith.constant 0 : i32
    %0 = arith.cmpi eq, %arg1, %c0_i32 : i32
    %1 = arith.extui %0 : i1 to i32
    %c0_i32_0 = arith.constant 0 : i32
    %2 = arith.cmpi ne, %1, %c0_i32_0 : i32
    scf.if %2 {
      %cst_97 = arith.constant 0.000000e+00 : f32
      %269 = vector.broadcast %cst_97 : f32 to vector<32x200xf32>
      %c0_98 = arith.constant 0 : index
      %c0_99 = arith.constant 0 : index
      %270 = vector.load %arg5[%c0_98, %c0_99] : memref<32x200xf32, #tpu.memory_space<vmem>>, vector<32x200xf32>
      tpu.vector_store %arg5[%c0_98, %c0_99], %269 {strides = array<i32>} : memref<32x200xf32, #tpu.memory_space<vmem>>, vector<32x200xf32>,
    } else {
    }
    %c2_i32 = arith.constant 2 : i32
    %3 = arith.muli %arg0, %c2_i32 : i32
    %4 = arith.addi %3, %arg1 : i32
    %c128_i32 = arith.constant 128 : i32
    %5 = arith.muli %4, %c128_i32 : i32
    %c0_i32_1 = arith.constant 0 : i32
    %c32_i32 = arith.constant 32 : i32
    %6 = arith.muli %c0_i32_1, %c32_i32 : i32
    %7 = tpu.assume_multiple %6, 32 : i32
    %8 = arith.index_cast %7 : i32 to index
    %c0 = arith.constant 0 : index
    %9 = vector.load %arg2[%8, %c0] : memref<128x401xf32, #tpu.memory_space<vmem>>, vector<32x401xf32>
    %10 = vector.extract_strided_slice %9 {offsets = [0, 0], sizes = [32, 200], strides = [1, 1]} : vector<32x401xf32> to vector<32x200xf32>
    %cst = arith.constant -4.000000e+00 : f32
    %cst_2 = arith.constant 1.000000e+01 : f32
    %11 = vector.broadcast %cst : f32 to vector<32x200xf32>
    %12 = arith.maximumf %11, %10 : vector<32x200xf32>
    %13 = vector.broadcast %cst_2 : f32 to vector<32x200xf32>
    %14 = arith.minimumf %13, %12 : vector<32x200xf32>
    %cst_3 = arith.constant 0.000000e+00 : f32
    %15 = vector.broadcast %cst_3 : f32 to vector<32x200xf32>
    %16 = arith.subf %15, %14 : vector<32x200xf32>
    %17 = math.exp %16 : vector<32x200xf32>
    %cst_4 = arith.constant 0.000000e+00 : f32
    %18 = vector.broadcast %cst_4 : f32 to vector<32x200xf32>
    %19 = arith.subf %18, %17 : vector<32x200xf32>
    %20 = math.exp %19 : vector<32x200xf32>
    %21 = vector.extract_strided_slice %9 {offsets = [0, 200], sizes = [32, 200], strides = [1, 1]} : vector<32x401xf32> to vector<32x200xf32>
    %cst_5 = arith.constant -1.200000e+01 : f32
    %cst_6 = arith.constant 1.200000e+01 : f32
    %22 = vector.broadcast %cst_5 : f32 to vector<32x200xf32>
    %23 = arith.maximumf %22, %21 : vector<32x200xf32>
    %24 = vector.broadcast %cst_6 : f32 to vector<32x200xf32>
    %25 = arith.minimumf %24, %23 : vector<32x200xf32>
    %cst_7 = arith.constant 5.000000e-01 : f32
    %26 = vector.broadcast %cst_7 : f32 to vector<32x200xf32>
    %27 = arith.mulf %26, %25 : vector<32x200xf32>
    %28 = math.tanh %27 : vector<32x200xf32>
    %cst_8 = arith.constant 5.000000e-01 : f32
    %29 = vector.broadcast %cst_8 : f32 to vector<32x200xf32>
    %30 = arith.mulf %29, %28 : vector<32x200xf32>
    %cst_9 = arith.constant 5.000000e-01 : f32
    %31 = vector.broadcast %cst_9 : f32 to vector<32x200xf32>
    %32 = arith.addf %30, %31 : vector<32x200xf32>
    %33 = vector.extract_strided_slice %9 {offsets = [0, 400], sizes = [32, 1], strides = [1, 1]} : vector<32x401xf32> to vector<32x1xf32>
    %cst_10 = arith.constant 5.000000e-01 : f32
    %34 = vector.broadcast %cst_10 : f32 to vector<32x1xf32>
    %35 = arith.mulf %34, %33 : vector<32x1xf32>
    %36 = math.tanh %35 : vector<32x1xf32>
    %cst_11 = arith.constant 5.000000e-01 : f32
    %37 = vector.broadcast %cst_11 : f32 to vector<32x1xf32>
    %38 = arith.mulf %37, %36 : vector<32x1xf32>
    %cst_12 = arith.constant 5.000000e-01 : f32
    %39 = vector.broadcast %cst_12 : f32 to vector<32x1xf32>
    %40 = arith.addf %38, %39 : vector<32x1xf32>
    %41 = arith.subf %20, %32 : vector<32x200xf32>
    %42 = vector.broadcast %40 : vector<32x1xf32> to vector<32x200xf32>
    %43 = arith.mulf %42, %41 : vector<32x200xf32>
    %44 = arith.addf %32, %43 : vector<32x200xf32>
    %45 = arith.index_cast %7 : i32 to index
    %c0_13 = arith.constant 0 : index
    %46 = vector.load %arg3[%45, %c0_13] : memref<128x1xi32, #tpu.memory_space<vmem>>, vector<32x1xi32>
    %47 = tpu.iota {dimensions = array<i32: 1>} : vector<32x200xi32>
    %48 = vector.broadcast %46 : vector<32x1xi32> to vector<32x200xi32>
    %49 = arith.cmpi eq, %47, %48 : vector<32x200xi32>
    %cst_14 = arith.constant 1.000000e+00 : f32
    %50 = vector.broadcast %cst_14 : f32 to vector<32x200xf32>
    %51 = arith.subf %50, %44 : vector<32x200xf32>
    %52 = arith.select %49, %44, %51 : vector<32x200xi1>, vector<32x200xf32>
    %53 = math.log %52 : vector<32x200xf32>
    %cst_15 = arith.constant -1.000000e+02 : f32
    %54 = vector.broadcast %cst_15 : f32 to vector<32x200xf32>
    %55 = arith.maximumf %53, %54 : vector<32x200xf32>
    %cst_16 = arith.constant 0.000000e+00 : f32
    %56 = vector.broadcast %cst_16 : f32 to vector<32x200xf32>
    %57 = arith.subf %56, %55 : vector<32x200xf32>
    %58 = arith.addi %5, %7 : i32
    %59 = tpu.iota {dimensions = array<i32: 0>} : vector<32x1xi32>
    %60 = vector.broadcast %58 : i32 to vector<32x1xi32>
    %61 = arith.addi %60, %59 : vector<32x1xi32>
    %c500_i32 = arith.constant 500 : i32
    %62 = vector.broadcast %c500_i32 : i32 to vector<32x1xi32>
    %63 = arith.cmpi slt, %61, %62 : vector<32x1xi32>
    %cst_17 = arith.constant 0.000000e+00 : f32
    %64 = vector.shape_cast %63 : vector<32x1xi1> to vector<32x1xi1>
    %65 = vector.broadcast %64 : vector<32x1xi1> to vector<32x200xi1>
    %66 = vector.broadcast %cst_17 : f32 to vector<32x200xf32>
    %67 = arith.select %65, %57, %66 : vector<32x200xi1>, vector<32x200xf32>
    %c0_18 = arith.constant 0 : index
    %c0_19 = arith.constant 0 : index
    %68 = vector.load %arg5[%c0_18, %c0_19] : memref<32x200xf32, #tpu.memory_space<vmem>>, vector<32x200xf32>
    %69 = arith.addf %68, %67 : vector<32x200xf32>
    %c0_20 = arith.constant 0 : index
    %c0_21 = arith.constant 0 : index
    %70 = vector.load %arg5[%c0_20, %c0_21] : memref<32x200xf32, #tpu.memory_space<vmem>>, vector<32x200xf32>
    tpu.vector_store %arg5[%c0_20, %c0_21], %69 {strides = array<i32>} : memref<32x200xf32, #tpu.memory_space<vmem>>, vector<32x200xf32>,
    %c1_i32 = arith.constant 1 : i32
    %c32_i32_22 = arith.constant 32 : i32
    %71 = arith.muli %c1_i32, %c32_i32_22 : i32
    %72 = tpu.assume_multiple %71, 32 : i32
    %73 = arith.index_cast %72 : i32 to index
    %c0_23 = arith.constant 0 : index
    %74 = vector.load %arg2[%73, %c0_23] : memref<128x401xf32, #tpu.memory_space<vmem>>, vector<32x401xf32>
    %75 = vector.extract_strided_slice %74 {offsets = [0, 0], sizes = [32, 200], strides = [1, 1]} : vector<32x401xf32> to vector<32x200xf32>
    %cst_24 = arith.constant -4.000000e+00 : f32
    %cst_25 = arith.constant 1.000000e+01 : f32
    %76 = vector.broadcast %cst_24 : f32 to vector<32x200xf32>
    %77 = arith.maximumf %76, %75 : vector<32x200xf32>
    %78 = vector.broadcast %cst_25 : f32 to vector<32x200xf32>
    %79 = arith.minimumf %78, %77 : vector<32x200xf32>
    %cst_26 = arith.constant 0.000000e+00 : f32
    %80 = vector.broadcast %cst_26 : f32 to vector<32x200xf32>
    %81 = arith.subf %80, %79 : vector<32x200xf32>
    %82 = math.exp %81 : vector<32x200xf32>
    %cst_27 = arith.constant 0.000000e+00 : f32
    %83 = vector.broadcast %cst_27 : f32 to vector<32x200xf32>
    %84 = arith.subf %83, %82 : vector<32x200xf32>
    %85 = math.exp %84 : vector<32x200xf32>
    %86 = vector.extract_strided_slice %74 {offsets = [0, 200], sizes = [32, 200], strides = [1, 1]} : vector<32x401xf32> to vector<32x200xf32>
    %cst_28 = arith.constant -1.200000e+01 : f32
    %cst_29 = arith.constant 1.200000e+01 : f32
    %87 = vector.broadcast %cst_28 : f32 to vector<32x200xf32>
    %88 = arith.maximumf %87, %86 : vector<32x200xf32>
    %89 = vector.broadcast %cst_29 : f32 to vector<32x200xf32>
    %90 = arith.minimumf %89, %88 : vector<32x200xf32>
    %cst_30 = arith.constant 5.000000e-01 : f32
    %91 = vector.broadcast %cst_30 : f32 to vector<32x200xf32>
    %92 = arith.mulf %91, %90 : vector<32x200xf32>
    %93 = math.tanh %92 : vector<32x200xf32>
    %cst_31 = arith.constant 5.000000e-01 : f32
    %94 = vector.broadcast %cst_31 : f32 to vector<32x200xf32>
    %95 = arith.mulf %94, %93 : vector<32x200xf32>
    %cst_32 = arith.constant 5.000000e-01 : f32
    %96 = vector.broadcast %cst_32 : f32 to vector<32x200xf32>
    %97 = arith.addf %95, %96 : vector<32x200xf32>
    %98 = vector.extract_strided_slice %74 {offsets = [0, 400], sizes = [32, 1], strides = [1, 1]} : vector<32x401xf32> to vector<32x1xf32>
    %cst_33 = arith.constant 5.000000e-01 : f32
    %99 = vector.broadcast %cst_33 : f32 to vector<32x1xf32>
    %100 = arith.mulf %99, %98 : vector<32x1xf32>
    %101 = math.tanh %100 : vector<32x1xf32>
    %cst_34 = arith.constant 5.000000e-01 : f32
    %102 = vector.broadcast %cst_34 : f32 to vector<32x1xf32>
    %103 = arith.mulf %102, %101 : vector<32x1xf32>
    %cst_35 = arith.constant 5.000000e-01 : f32
    %104 = vector.broadcast %cst_35 : f32 to vector<32x1xf32>
    %105 = arith.addf %103, %104 : vector<32x1xf32>
    %106 = arith.subf %85, %97 : vector<32x200xf32>
    %107 = vector.broadcast %105 : vector<32x1xf32> to vector<32x200xf32>
    %108 = arith.mulf %107, %106 : vector<32x200xf32>
    %109 = arith.addf %97, %108 : vector<32x200xf32>
    %110 = arith.index_cast %72 : i32 to index
    %c0_36 = arith.constant 0 : index
    %111 = vector.load %arg3[%110, %c0_36] : memref<128x1xi32, #tpu.memory_space<vmem>>, vector<32x1xi32>
    %112 = tpu.iota {dimensions = array<i32: 1>} : vector<32x200xi32>
    %113 = vector.broadcast %111 : vector<32x1xi32> to vector<32x200xi32>
    %114 = arith.cmpi eq, %112, %113 : vector<32x200xi32>
    %cst_37 = arith.constant 1.000000e+00 : f32
    %115 = vector.broadcast %cst_37 : f32 to vector<32x200xf32>
    %116 = arith.subf %115, %109 : vector<32x200xf32>
    %117 = arith.select %114, %109, %116 : vector<32x200xi1>, vector<32x200xf32>
    %118 = math.log %117 : vector<32x200xf32>
    %cst_38 = arith.constant -1.000000e+02 : f32
    %119 = vector.broadcast %cst_38 : f32 to vector<32x200xf32>
    %120 = arith.maximumf %118, %119 : vector<32x200xf32>
    %cst_39 = arith.constant 0.000000e+00 : f32
    %121 = vector.broadcast %cst_39 : f32 to vector<32x200xf32>
    %122 = arith.subf %121, %120 : vector<32x200xf32>
    %123 = arith.addi %5, %72 : i32
    %124 = tpu.iota {dimensions = array<i32: 0>} : vector<32x1xi32>
    %125 = vector.broadcast %123 : i32 to vector<32x1xi32>
    %126 = arith.addi %125, %124 : vector<32x1xi32>
    %c500_i32_40 = arith.constant 500 : i32
    %127 = vector.broadcast %c500_i32_40 : i32 to vector<32x1xi32>
    %128 = arith.cmpi slt, %126, %127 : vector<32x1xi32>
    %cst_41 = arith.constant 0.000000e+00 : f32
    %129 = vector.shape_cast %128 : vector<32x1xi1> to vector<32x1xi1>
    %130 = vector.broadcast %129 : vector<32x1xi1> to vector<32x200xi1>
    %131 = vector.broadcast %cst_41 : f32 to vector<32x200xf32>
    %132 = arith.select %130, %122, %131 : vector<32x200xi1>, vector<32x200xf32>
    %c0_42 = arith.constant 0 : index
    %c0_43 = arith.constant 0 : index
    %133 = vector.load %arg5[%c0_42, %c0_43] : memref<32x200xf32, #tpu.memory_space<vmem>>, vector<32x200xf32>
    %134 = arith.addf %133, %132 : vector<32x200xf32>
    %c0_44 = arith.constant 0 : index
    %c0_45 = arith.constant 0 : index
    %135 = vector.load %arg5[%c0_44, %c0_45] : memref<32x200xf32, #tpu.memory_space<vmem>>, vector<32x200xf32>
    tpu.vector_store %arg5[%c0_44, %c0_45], %134 {strides = array<i32>} : memref<32x200xf32, #tpu.memory_space<vmem>>, vector<32x200xf32>,
    %c2_i32_46 = arith.constant 2 : i32
    %c32_i32_47 = arith.constant 32 : i32
    %136 = arith.muli %c2_i32_46, %c32_i32_47 : i32
    %137 = tpu.assume_multiple %136, 32 : i32
    %138 = arith.index_cast %137 : i32 to index
    %c0_48 = arith.constant 0 : index
    %139 = vector.load %arg2[%138, %c0_48] : memref<128x401xf32, #tpu.memory_space<vmem>>, vector<32x401xf32>
    %140 = vector.extract_strided_slice %139 {offsets = [0, 0], sizes = [32, 200], strides = [1, 1]} : vector<32x401xf32> to vector<32x200xf32>
    %cst_49 = arith.constant -4.000000e+00 : f32
    %cst_50 = arith.constant 1.000000e+01 : f32
    %141 = vector.broadcast %cst_49 : f32 to vector<32x200xf32>
    %142 = arith.maximumf %141, %140 : vector<32x200xf32>
    %143 = vector.broadcast %cst_50 : f32 to vector<32x200xf32>
    %144 = arith.minimumf %143, %142 : vector<32x200xf32>
    %cst_51 = arith.constant 0.000000e+00 : f32
    %145 = vector.broadcast %cst_51 : f32 to vector<32x200xf32>
    %146 = arith.subf %145, %144 : vector<32x200xf32>
    %147 = math.exp %146 : vector<32x200xf32>
    %cst_52 = arith.constant 0.000000e+00 : f32
    %148 = vector.broadcast %cst_52 : f32 to vector<32x200xf32>
    %149 = arith.subf %148, %147 : vector<32x200xf32>
    %150 = math.exp %149 : vector<32x200xf32>
    %151 = vector.extract_strided_slice %139 {offsets = [0, 200], sizes = [32, 200], strides = [1, 1]} : vector<32x401xf32> to vector<32x200xf32>
    %cst_53 = arith.constant -1.200000e+01 : f32
    %cst_54 = arith.constant 1.200000e+01 : f32
    %152 = vector.broadcast %cst_53 : f32 to vector<32x200xf32>
    %153 = arith.maximumf %152, %151 : vector<32x200xf32>
    %154 = vector.broadcast %cst_54 : f32 to vector<32x200xf32>
    %155 = arith.minimumf %154, %153 : vector<32x200xf32>
    %cst_55 = arith.constant 5.000000e-01 : f32
    %156 = vector.broadcast %cst_55 : f32 to vector<32x200xf32>
    %157 = arith.mulf %156, %155 : vector<32x200xf32>
    %158 = math.tanh %157 : vector<32x200xf32>
    %cst_56 = arith.constant 5.000000e-01 : f32
    %159 = vector.broadcast %cst_56 : f32 to vector<32x200xf32>
    %160 = arith.mulf %159, %158 : vector<32x200xf32>
    %cst_57 = arith.constant 5.000000e-01 : f32
    %161 = vector.broadcast %cst_57 : f32 to vector<32x200xf32>
    %162 = arith.addf %160, %161 : vector<32x200xf32>
    %163 = vector.extract_strided_slice %139 {offsets = [0, 400], sizes = [32, 1], strides = [1, 1]} : vector<32x401xf32> to vector<32x1xf32>
    %cst_58 = arith.constant 5.000000e-01 : f32
    %164 = vector.broadcast %cst_58 : f32 to vector<32x1xf32>
    %165 = arith.mulf %164, %163 : vector<32x1xf32>
    %166 = math.tanh %165 : vector<32x1xf32>
    %cst_59 = arith.constant 5.000000e-01 : f32
    %167 = vector.broadcast %cst_59 : f32 to vector<32x1xf32>
    %168 = arith.mulf %167, %166 : vector<32x1xf32>
    %cst_60 = arith.constant 5.000000e-01 : f32
    %169 = vector.broadcast %cst_60 : f32 to vector<32x1xf32>
    %170 = arith.addf %168, %169 : vector<32x1xf32>
    %171 = arith.subf %150, %162 : vector<32x200xf32>
    %172 = vector.broadcast %170 : vector<32x1xf32> to vector<32x200xf32>
    %173 = arith.mulf %172, %171 : vector<32x200xf32>
    %174 = arith.addf %162, %173 : vector<32x200xf32>
    %175 = arith.index_cast %137 : i32 to index
    %c0_61 = arith.constant 0 : index
    %176 = vector.load %arg3[%175, %c0_61] : memref<128x1xi32, #tpu.memory_space<vmem>>, vector<32x1xi32>
    %177 = tpu.iota {dimensions = array<i32: 1>} : vector<32x200xi32>
    %178 = vector.broadcast %176 : vector<32x1xi32> to vector<32x200xi32>
    %179 = arith.cmpi eq, %177, %178 : vector<32x200xi32>
    %cst_62 = arith.constant 1.000000e+00 : f32
    %180 = vector.broadcast %cst_62 : f32 to vector<32x200xf32>
    %181 = arith.subf %180, %174 : vector<32x200xf32>
    %182 = arith.select %179, %174, %181 : vector<32x200xi1>, vector<32x200xf32>
    %183 = math.log %182 : vector<32x200xf32>
    %cst_63 = arith.constant -1.000000e+02 : f32
    %184 = vector.broadcast %cst_63 : f32 to vector<32x200xf32>
    %185 = arith.maximumf %183, %184 : vector<32x200xf32>
    %cst_64 = arith.constant 0.000000e+00 : f32
    %186 = vector.broadcast %cst_64 : f32 to vector<32x200xf32>
    %187 = arith.subf %186, %185 : vector<32x200xf32>
    %188 = arith.addi %5, %137 : i32
    %189 = tpu.iota {dimensions = array<i32: 0>} : vector<32x1xi32>
    %190 = vector.broadcast %188 : i32 to vector<32x1xi32>
    %191 = arith.addi %190, %189 : vector<32x1xi32>
    %c500_i32_65 = arith.constant 500 : i32
    %192 = vector.broadcast %c500_i32_65 : i32 to vector<32x1xi32>
    %193 = arith.cmpi slt, %191, %192 : vector<32x1xi32>
    %cst_66 = arith.constant 0.000000e+00 : f32
    %194 = vector.shape_cast %193 : vector<32x1xi1> to vector<32x1xi1>
    %195 = vector.broadcast %194 : vector<32x1xi1> to vector<32x200xi1>
    %196 = vector.broadcast %cst_66 : f32 to vector<32x200xf32>
    %197 = arith.select %195, %187, %196 : vector<32x200xi1>, vector<32x200xf32>
    %c0_67 = arith.constant 0 : index
    %c0_68 = arith.constant 0 : index
    %198 = vector.load %arg5[%c0_67, %c0_68] : memref<32x200xf32, #tpu.memory_space<vmem>>, vector<32x200xf32>
    %199 = arith.addf %198, %197 : vector<32x200xf32>
    %c0_69 = arith.constant 0 : index
    %c0_70 = arith.constant 0 : index
    %200 = vector.load %arg5[%c0_69, %c0_70] : memref<32x200xf32, #tpu.memory_space<vmem>>, vector<32x200xf32>
    tpu.vector_store %arg5[%c0_69, %c0_70], %199 {strides = array<i32>} : memref<32x200xf32, #tpu.memory_space<vmem>>, vector<32x200xf32>,
    %c3_i32 = arith.constant 3 : i32
    %c32_i32_71 = arith.constant 32 : i32
    %201 = arith.muli %c3_i32, %c32_i32_71 : i32
    %202 = tpu.assume_multiple %201, 32 : i32
    %203 = arith.index_cast %202 : i32 to index
    %c0_72 = arith.constant 0 : index
    %204 = vector.load %arg2[%203, %c0_72] : memref<128x401xf32, #tpu.memory_space<vmem>>, vector<32x401xf32>
    %205 = vector.extract_strided_slice %204 {offsets = [0, 0], sizes = [32, 200], strides = [1, 1]} : vector<32x401xf32> to vector<32x200xf32>
    %cst_73 = arith.constant -4.000000e+00 : f32
    %cst_74 = arith.constant 1.000000e+01 : f32
    %206 = vector.broadcast %cst_73 : f32 to vector<32x200xf32>
    %207 = arith.maximumf %206, %205 : vector<32x200xf32>
    %208 = vector.broadcast %cst_74 : f32 to vector<32x200xf32>
    %209 = arith.minimumf %208, %207 : vector<32x200xf32>
    %cst_75 = arith.constant 0.000000e+00 : f32
    %210 = vector.broadcast %cst_75 : f32 to vector<32x200xf32>
    %211 = arith.subf %210, %209 : vector<32x200xf32>
    %212 = math.exp %211 : vector<32x200xf32>
    %cst_76 = arith.constant 0.000000e+00 : f32
    %213 = vector.broadcast %cst_76 : f32 to vector<32x200xf32>
    %214 = arith.subf %213, %212 : vector<32x200xf32>
    %215 = math.exp %214 : vector<32x200xf32>
    %216 = vector.extract_strided_slice %204 {offsets = [0, 200], sizes = [32, 200], strides = [1, 1]} : vector<32x401xf32> to vector<32x200xf32>
    %cst_77 = arith.constant -1.200000e+01 : f32
    %cst_78 = arith.constant 1.200000e+01 : f32
    %217 = vector.broadcast %cst_77 : f32 to vector<32x200xf32>
    %218 = arith.maximumf %217, %216 : vector<32x200xf32>
    %219 = vector.broadcast %cst_78 : f32 to vector<32x200xf32>
    %220 = arith.minimumf %219, %218 : vector<32x200xf32>
    %cst_79 = arith.constant 5.000000e-01 : f32
    %221 = vector.broadcast %cst_79 : f32 to vector<32x200xf32>
    %222 = arith.mulf %221, %220 : vector<32x200xf32>
    %223 = math.tanh %222 : vector<32x200xf32>
    %cst_80 = arith.constant 5.000000e-01 : f32
    %224 = vector.broadcast %cst_80 : f32 to vector<32x200xf32>
    %225 = arith.mulf %224, %223 : vector<32x200xf32>
    %cst_81 = arith.constant 5.000000e-01 : f32
    %226 = vector.broadcast %cst_81 : f32 to vector<32x200xf32>
    %227 = arith.addf %225, %226 : vector<32x200xf32>
    %228 = vector.extract_strided_slice %204 {offsets = [0, 400], sizes = [32, 1], strides = [1, 1]} : vector<32x401xf32> to vector<32x1xf32>
    %cst_82 = arith.constant 5.000000e-01 : f32
    %229 = vector.broadcast %cst_82 : f32 to vector<32x1xf32>
    %230 = arith.mulf %229, %228 : vector<32x1xf32>
    %231 = math.tanh %230 : vector<32x1xf32>
    %cst_83 = arith.constant 5.000000e-01 : f32
    %232 = vector.broadcast %cst_83 : f32 to vector<32x1xf32>
    %233 = arith.mulf %232, %231 : vector<32x1xf32>
    %cst_84 = arith.constant 5.000000e-01 : f32
    %234 = vector.broadcast %cst_84 : f32 to vector<32x1xf32>
    %235 = arith.addf %233, %234 : vector<32x1xf32>
    %236 = arith.subf %215, %227 : vector<32x200xf32>
    %237 = vector.broadcast %235 : vector<32x1xf32> to vector<32x200xf32>
    %238 = arith.mulf %237, %236 : vector<32x200xf32>
    %239 = arith.addf %227, %238 : vector<32x200xf32>
    %240 = arith.index_cast %202 : i32 to index
    %c0_85 = arith.constant 0 : index
    %241 = vector.load %arg3[%240, %c0_85] : memref<128x1xi32, #tpu.memory_space<vmem>>, vector<32x1xi32>
    %242 = tpu.iota {dimensions = array<i32: 1>} : vector<32x200xi32>
    %243 = vector.broadcast %241 : vector<32x1xi32> to vector<32x200xi32>
    %244 = arith.cmpi eq, %242, %243 : vector<32x200xi32>
    %cst_86 = arith.constant 1.000000e+00 : f32
    %245 = vector.broadcast %cst_86 : f32 to vector<32x200xf32>
    %246 = arith.subf %245, %239 : vector<32x200xf32>
    %247 = arith.select %244, %239, %246 : vector<32x200xi1>, vector<32x200xf32>
    %248 = math.log %247 : vector<32x200xf32>
    %cst_87 = arith.constant -1.000000e+02 : f32
    %249 = vector.broadcast %cst_87 : f32 to vector<32x200xf32>
    %250 = arith.maximumf %248, %249 : vector<32x200xf32>
    %cst_88 = arith.constant 0.000000e+00 : f32
    %251 = vector.broadcast %cst_88 : f32 to vector<32x200xf32>
    %252 = arith.subf %251, %250 : vector<32x200xf32>
    %253 = arith.addi %5, %202 : i32
    %254 = tpu.iota {dimensions = array<i32: 0>} : vector<32x1xi32>
    %255 = vector.broadcast %253 : i32 to vector<32x1xi32>
    %256 = arith.addi %255, %254 : vector<32x1xi32>
    %c500_i32_89 = arith.constant 500 : i32
    %257 = vector.broadcast %c500_i32_89 : i32 to vector<32x1xi32>
    %258 = arith.cmpi slt, %256, %257 : vector<32x1xi32>
    %cst_90 = arith.constant 0.000000e+00 : f32
    %259 = vector.shape_cast %258 : vector<32x1xi1> to vector<32x1xi1>
    %260 = vector.broadcast %259 : vector<32x1xi1> to vector<32x200xi1>
    %261 = vector.broadcast %cst_90 : f32 to vector<32x200xf32>
    %262 = arith.select %260, %252, %261 : vector<32x200xi1>, vector<32x200xf32>
    %c0_91 = arith.constant 0 : index
    %c0_92 = arith.constant 0 : index
    %263 = vector.load %arg5[%c0_91, %c0_92] : memref<32x200xf32, #tpu.memory_space<vmem>>, vector<32x200xf32>
    %264 = arith.addf %263, %262 : vector<32x200xf32>
    %c0_93 = arith.constant 0 : index
    %c0_94 = arith.constant 0 : index
    %265 = vector.load %arg5[%c0_93, %c0_94] : memref<32x200xf32, #tpu.memory_space<vmem>>, vector<32x200xf32>
    tpu.vector_store %arg5[%c0_93, %c0_94], %264 {strides = array<i32>} : memref<32x200xf32, #tpu.memory_space<vmem>>, vector<32x200xf32>,
    %c4_i32 = arith.constant 4 : i32
    %c1_i32_95 = arith.constant 1 : i32
    %266 = arith.cmpi eq, %arg1, %c1_i32_95 : i32
    %267 = arith.extui %266 : i1 to i32
    %c0_i32_96 = arith.constant 0 : i32
    %268 = arith.cmpi ne, %267, %c0_i32_96 : i32
    scf.if %268 {
      %c0_97 = arith.constant 0 : index
      %c0_98 = arith.constant 0 : index
      %269 = vector.load %arg5[%c0_97, %c0_98] : memref<32x200xf32, #tpu.memory_space<vmem>>, vector<32x200xf32>
      %270 = vector.shape_cast %269 : vector<32x200xf32> to vector<1x32x200xf32>
      %cst_99 = arith.constant dense<0.000000e+00> : vector<1xf32>
      %271 = vector.multi_reduction <add>, %270, %cst_99 [1, 2] : vector<1x32x200xf32> to vector<1xf32>
      %272 = vector.shape_cast %271 : vector<1xf32> to vector<1x1x1xf32>
      %273 = vector.extract %272[0, 0, 0] : f32 from vector<1x1x1xf32>
      %274 = vector.broadcast %273 : f32 to vector<1x1x128xf32>
      %c0_100 = arith.constant 0 : index
      %c0_101 = arith.constant 0 : index
      %c0_102 = arith.constant 0 : index
      %275 = vector.load %arg4[%c0_100, %c0_101, %c0_102] : memref<1x1x128xf32, #tpu.memory_space<vmem>>, vector<1x1x128xf32>
      tpu.vector_store %arg4[%c0_100, %c0_101, %c0_102], %274 {strides = array<i32>} : memref<1x1x128xf32, #tpu.memory_space<vmem>>, vector<1x1x128xf32>,
    } else {
    }
    return
  }
  func.func @transform_0(%arg0: i32, %arg1: i32) -> (i32, i32) {
    %c2_i32 = arith.constant 2 : i32
    %0 = arith.muli %arg0, %c2_i32 : i32
    %1 = arith.addi %0, %arg1 : i32
    %c3_i32 = arith.constant 3 : i32
    %2 = arith.minsi %1, %c3_i32 : i32
    %c0_i32 = arith.constant 0 : i32
    %c0_i32_0 = arith.constant 0 : i32
    return %2, %c0_i32 : i32, i32
  }
  func.func @transform_1(%arg0: i32, %arg1: i32) -> (i32, i32) {
    %c2_i32 = arith.constant 2 : i32
    %0 = arith.muli %arg0, %c2_i32 : i32
    %1 = arith.addi %0, %arg1 : i32
    %c3_i32 = arith.constant 3 : i32
    %2 = arith.minsi %1, %c3_i32 : i32
    %c0_i32 = arith.constant 0 : i32
    %c0_i32_0 = arith.constant 0 : i32
    return %2, %c0_i32 : i32, i32
  }
  func.func @transform_2(%arg0: i32, %arg1: i32) -> (i32, i32, i32) {
    %c0_i32 = arith.constant 0 : i32
    %c0_i32_0 = arith.constant 0 : i32
    %c0_i32_1 = arith.constant 0 : i32
    return %arg0, %c0_i32, %c0_i32_0 : i32, i32, i32
  }
}

</mosaic_0001>

<llo_original>
// kernel: tpu_custom_call.1
$region0: #{tpu_custom_call.1}
  #allocation0 [shape = 'u32[]', space=smem, size = 0x4, offset = 0x4, fixed_abs, tag = 'smem constant byte address 0x4 - core index']
  #allocation1 [shape = 'u32[144,128]{1,0:T(1,128)}', space=vmem, size = 0x12000, scoped, tag = 'internal scratch']
  #allocation2 [shape = 'f32[32,200]{1,0:T(8,128)}', space=vmem, size = 0x8000, scoped, tag = 'scratch operand']
  %s0 = inlined_call_operand.vmem [shape: f32[500,401], index: 0, kind: input, shape index: {}]
  %s1 = inlined_call_operand.vmem [shape: s32[500,1], index: 1, kind: input, shape index: {}]
  %s2 = inlined_call_operand.hbm [shape: f32[2,1,128], index: 2, kind: output, shape index: {}]
  %s3 = sld [smem:[#allocation0]]
  $region49: #{tpu_custom_call.1} parent=0
    _
  %s5 = ssub.s32 1, %s3
  %s6 = scalar_select 0, %s5, %s3
  $region1: #{tpu_custom_call.1} parent=0
    #allocation3 [shape = 'u8[1024]{0}', space=vmem, size = 0x400, scoped, tag = 'output window, operand 0']
    #allocation4 [shape = 's32[2]{0}', space=sflag, size = 0x8, scoped, tag = 'scoped memory for tpu_custom_call.1']
    %7 = vsyncpa [#allocation4], 0
    %s8 = scalar_lea.sflag [#allocation4], 1
    %9 = vsyncpa %s8, 0
    loop: start=0, step=1, limit=6
    $region2: #{tpu_custom_call.1} parent=1 // loop_pre_header
      _
    $region3: #{tpu_custom_call.1} parent=1 // loop_header
      %s11 = sphi 0, %s15
      %p12 = scmp.ge.s32.totalorder %s11, 6
      %s18 = sphi 0, %s30
      %s19 = sphi 0, %s26
      %s20 = sphi 0, %s18
      %s21 = sphi 0, %s19
      %s22 = sphi 0, %s20
      %s23 = sphi 0, %s21
      %s41 = sphi 0, %s43
      %s44 = sphi 0, %s41
      %s45 = sphi 0, %s44
      %s61 = sphi 0, %s45
      %s75 = sphi 0, %s77
      %s78 = sphi 0, %s75
      %s79 = sphi 0, %s78
      %s95 = sphi 0, %s79
      %s101 = sphi 0, %s103
      %s104 = sphi 0, %s101
      %s105 = sphi 0, %s104
      %s121 = sphi 0, %s105
    $region4: #{tpu_custom_call.1} parent=1 // loop_header_branch
      %14 = sbr.rel (%p12) target = $region8
    $region5: #{tpu_custom_call.1} parent=1 // loop_body
      %s16 = ssub.s32 %s11, 1
      %s17 = ssub.s32 %s11, 2
      %s24 = sadd.s32 1, %s19
      %p25 = scmp.ge.s32.totalorder %s24, 2
      %s26 = scalar_select %p25, 0, %s24
      %s27 = sadd.s32 1, %s18
      %s28 = scalar_select %p25, %s27, %s18
      %p29 = scmp.ge.s32.totalorder %s28, 2
      %s30 = scalar_select %p29, 0, %s28
      %s31 = smul.u32 %s18, 2
      %s32 = sadd.s32 %s31, %s19
      %p33 = scmp.lt.s32.totalorder %s32, 3
      %s34 = scalar_select %p33, %s32, 3
      %s35 = smul.u32 %s30, 2
      %s36 = sadd.s32 %s35, %s26
      %p37 = scmp.lt.s32.totalorder %s36, 3
      %s38 = scalar_select %p37, %s36, 3
      %s39 = ssub.s32 %s34, %s38
      %p40 = scmp.eq.s32.totalorder %s39, 0
      %s42 = sadd.s32 %s41, 1
      %s43 = scalar_select %p40, %s41, %s42
      %p46 = pneg %p40
      %p47 = scmp.eq.s32.totalorder %s11, 3
      %p48 = por %p46, %p47
      %p49 = scmp.ne.s32.totalorder %s41, %s44
      %p50 = scmp.eq.s32.totalorder %s11, 0
      %p51 = por %p49, %p50
      %p52 = scmp.ne.s32.totalorder %s41, %s44
      %p53 = scmp.eq.s32.totalorder %s16, 3
      %p54 = por %p52, %p53
      %p55 = scmp.ne.s32.totalorder %s44, %s45
      %p56 = scmp.eq.s32.totalorder %s16, 0
      %p57 = por %p55, %p56
      %p58 = scmp.ne.s32.totalorder %s44, %s45
      %p59 = scmp.eq.s32.totalorder %s17, 3
      %p60 = por %p58, %p59
      %p62 = scmp.ne.s32.totalorder %s45, %s61
      %p63 = scmp.eq.s32.totalorder %s17, 0
      %p64 = por %p62, %p63
      %s65 = smul.u32 %s18, 2
      %s66 = sadd.s32 %s65, %s19
      %p67 = scmp.lt.s32.totalorder %s66, 3
      %s68 = scalar_select %p67, %s66, 3
      %s69 = smul.u32 %s30, 2
      %s70 = sadd.s32 %s69, %s26
      %p71 = scmp.lt.s32.totalorder %s70, 3
      %s72 = scalar_select %p71, %s70, 3
      %s73 = ssub.s32 %s68, %s72
      %p74 = scmp.eq.s32.totalorder %s73, 0
      %s76 = sadd.s32 %s75, 1
      %s77 = scalar_select %p74, %s75, %s76
      %p80 = pneg %p74
      %p81 = scmp.eq.s32.totalorder %s11, 3
      %p82 = por %p80, %p81
      %p83 = scmp.ne.s32.totalorder %s75, %s78
      %p84 = scmp.eq.s32.totalorder %s11, 0
      %p85 = por %p83, %p84
      %p86 = scmp.ne.s32.totalorder %s75, %s78
      %p87 = scmp.eq.s32.totalorder %s16, 3
      %p88 = por %p86, %p87
      %p89 = scmp.ne.s32.totalorder %s78, %s79
      %p90 = scmp.eq.s32.totalorder %s16, 0
      %p91 = por %p89, %p90
      %p92 = scmp.ne.s32.totalorder %s78, %s79
      %p93 = scmp.eq.s32.totalorder %s17, 3
      %p94 = por %p92, %p93
      %p96 = scmp.ne.s32.totalorder %s79, %s95
      %p97 = scmp.eq.s32.totalorder %s17, 0
      %p98 = por %p96, %p97
      %s99 = ssub.s32 %s18, %s30
      %p100 = scmp.eq.s32.totalorder %s99, 0
      %s102 = sadd.s32 %s101, 1
      %s103 = scalar_select %p100, %s101, %s102
      %p106 = pneg %p100
      %p107 = scmp.eq.s32.totalorder %s11, 3
      %p108 = por %p106, %p107
      %p109 = scmp.ne.s32.totalorder %s101, %s104
      %p110 = scmp.eq.s32.totalorder %s11, 0
      %p111 = por %p109, %p110
      %p112 = scmp.ne.s32.totalorder %s101, %s104
      %p113 = scmp.eq.s32.totalorder %s16, 3
      %p114 = por %p112, %p113
      %p115 = scmp.ne.s32.totalorder %s104, %s105
      %p116 = scmp.eq.s32.totalorder %s16, 0
      %p117 = por %p115, %p116
      %p118 = scmp.ne.s32.totalorder %s104, %s105
      %p119 = scmp.eq.s32.totalorder %s17, 3
      %p120 = por %p118, %p119
      %p122 = scmp.ne.s32.totalorder %s105, %s121
      %p123 = scmp.eq.s32.totalorder %s17, 0
      %p124 = por %p122, %p123
      %p125 = scmp.le.s32.totalorder 1, %s11
      %p126 = scmp.lt.s32.totalorder %s11, 5
      %p127 = pnand %p125, %p126
      %p128 = pneg %p127
      // Predicated region
      $region9: #{tpu_custom_call.1} parent=5 // pred_check
        _
      $region10: #{tpu_custom_call.1} parent=5 // pred_check_branch
        %130 = sbr.rel (%p127) target = $region12
      $region11: #{tpu_custom_call.1} parent=5 // pred_region
        %s131 = ssub.s32 %s11, 1
      $region12: #{tpu_custom_call.1} parent=5 // pred_fallthru
        _
      %p132 = scmp.lt.s32.totalorder %s11, 4
      // Predicated region
      $region13: #{tpu_custom_call.1} parent=5 // pred_check
        %p133 = pneg %p132
      $region14: #{tpu_custom_call.1} parent=5 // pred_check_branch
        %135 = sbr.rel (%p133) target = $region16
      $region15: #{tpu_custom_call.1} parent=5 // pred_region
        // Predicated region
        $region17: #{tpu_custom_call.1} parent=15 // pred_check
          %p136 = pneg %p51
        $region18: #{tpu_custom_call.1} parent=15 // pred_check_branch
          %138 = sbr.rel (%p136) target = $region20
        $region19: #{tpu_custom_call.1} parent=15 // pred_region
          %s139 = smul.u32 %s18, 2
          %s140 = sadd.s32 %s139, %s19
          %p141 = scmp.lt.s32.totalorder %s140, 3
          %s142 = scalar_select %p141, %s140, 3
          %s143 = smul.u32 16, %s142
          %s144 = ssub.s32 63, %s143
          %p145 = scmp.lt.s32.totalorder %s144, 16
          %s146 = scalar_select %p145, %s144, 16
          %s147 = smul.u32 128, %s146
          %s148 = smul.u32 %s147, 4
          %p149 = scmp.lt.s32.totalorder %s143, 62
          %s150 = scalar_select %p149, %s143, 62
          %s151 = smul.addr %s150, 4
          %s152 = smul.addr %s151, 8
          %s153 = scalar_lea.vmem %s0, %s152
          %s154 = smul.u32 %s18, 2
          %s155 = sadd.s32 %s154, %s19
          %p156 = scmp.lt.s32.totalorder %s155, 3
          %s157 = scalar_select %p156, %s155, 3
          %s158 = smul.u32 16, %s157
          %s159 = ssub.s32 63, %s158
          %p160 = scmp.lt.s32.totalorder %s159, 16
          %s161 = scalar_select %p160, %s159, 16
          %s162 = smul.u32 128, %s161
          %s163 = smul.u32 %s162, 4
        $region20: #{tpu_custom_call.1} parent=15 // pred_fallthru
          _
        // Predicated region
        $region21: #{tpu_custom_call.1} parent=15 // pred_check
          %p164 = pneg %p85
        $region22: #{tpu_custom_call.1} parent=15 // pred_check_branch
          %166 = sbr.rel (%p164) target = $region24
        $region23: #{tpu_custom_call.1} parent=15 // pred_region
          %s167 = smul.u32 %s18, 2
          %s168 = sadd.s32 %s167, %s19
          %p169 = scmp.lt.s32.totalorder %s168, 3
          %s170 = scalar_select %p169, %s168, 3
          %s171 = smul.u32 16, %s170
          %s172 = ssub.s32 63, %s171
          %p173 = scmp.lt.s32.totalorder %s172, 16
          %s174 = scalar_select %p173, %s172, 16
          %s175 = smul.u32 128, %s174
          %p176 = scmp.lt.s32.totalorder %s171, 62
          %s177 = scalar_select %p176, %s171, 62
          %s178 = smul.addr %s177, 8
          %s179 = scalar_lea.vmem %s1, %s178
          %s180 = smul.u32 %s18, 2
          %s181 = sadd.s32 %s180, %s19
          %p182 = scmp.lt.s32.totalorder %s181, 3
          %s183 = scalar_select %p182, %s181, 3
          %s184 = smul.u32 16, %s183
          %s185 = ssub.s32 63, %s184
          %p186 = scmp.lt.s32.totalorder %s185, 16
          %s187 = scalar_select %p186, %s185, 16
          %s188 = smul.u32 128, %s187
        $region24: #{tpu_custom_call.1} parent=15 // pred_fallthru
          _
      $region16: #{tpu_custom_call.1} parent=5 // pred_fallthru
        _
      %p189 = scmp.le.s32.totalorder 1, %s11
      %p190 = scmp.lt.s32.totalorder %s11, 5
      %p191 = pnand %p189, %p190
      %p192 = pneg %p191
      // Predicated region
      $region25: #{tpu_custom_call.1} parent=5 // pred_check
        _
      $region26: #{tpu_custom_call.1} parent=5 // pred_check_branch
        %194 = sbr.rel (%p191) target = $region28
      $region27: #{tpu_custom_call.1} parent=5 // pred_region
        %s195 = ssub.s32 %s11, 1
        %s196 = smul.u32 %s20, 2
        %s197 = sadd.s32 %s196, %s21
        %p198 = scmp.lt.s32.totalorder %s197, 3
        %s199 = scalar_select %p198, %s197, 3
        %s200 = smul.u32 16, %s199
        %s201 = ssub.s32 63, %s200
        %p202 = scmp.lt.s32.totalorder %s201, 16
        %s203 = scalar_select %p202, %s201, 16
        %s204 = smul.u32 128, %s203
        %s205 = smul.u32 %s204, 4
        %p206 = scmp.lt.s32.totalorder %s200, 62
        %s207 = scalar_select %p206, %s200, 62
        %s208 = smul.addr %s207, 4
        %s209 = smul.addr %s208, 8
        %s210 = scalar_lea.vmem %s0, %s209
        %p211 = pneg %p57
        %p212 = pneg %p54
        %s213 = smul.u32 %s20, 2
        %s214 = sadd.s32 %s213, %s21
        %p215 = scmp.lt.s32.totalorder %s214, 3
        %s216 = scalar_select %p215, %s214, 3
        %s217 = smul.u32 16, %s216
        %s218 = ssub.s32 63, %s217
        %p219 = scmp.lt.s32.totalorder %s218, 16
        %s220 = scalar_select %p219, %s218, 16
        %s221 = smul.u32 128, %s220
        %p222 = scmp.lt.s32.totalorder %s217, 62
        %s223 = scalar_select %p222, %s217, 62
        %s224 = smul.addr %s223, 8
        %s225 = scalar_lea.vmem %s1, %s224
        %p226 = pneg %p91
        %p227 = pneg %p88
        %p228 = pneg %p117
        %p229 = pneg %p114
        %s230 = sand.u32 %s104, 1
        %s231 = scalar_lea.sflag [#allocation4], %s230
        %s232 = sand.u32 %s104, 1
        %s233 = scalar_lea.vmem [#allocation3], %s232
        %s234 = smul.u32 %s20, 2
        %s235 = sadd.s32 %s234, %s21
        %p236 = scmp.lt.s32.totalorder %s235, 3
        %s237 = scalar_select %p236, %s235, 3
        %s238 = smul.u32 16, %s237
        %s239 = ssub.s32 63, %s238
        %p240 = scmp.lt.s32.totalorder %s239, 16
        %s241 = scalar_select %p240, %s239, 16
        %s242 = smul.u32 128, %s241
        %s243 = smul.u32 %s242, 4
        %p244 = scmp.lt.s32.totalorder %s238, 62
        %s245 = scalar_select %p244, %s238, 62
        %s246 = smul.addr %s245, 4
        %s247 = smul.addr %s246, 8
        %s248 = scalar_lea.vmem %s0, %s247
        %s249 = smul.u32 %s20, 2
        %s250 = sadd.s32 %s249, %s21
        %p251 = scmp.lt.s32.totalorder %s250, 3
        %s252 = scalar_select %p251, %s250, 3
        %s253 = smul.u32 16, %s252
        %s254 = ssub.s32 63, %s253
        %p255 = scmp.lt.s32.totalorder %s254, 16
        %s256 = scalar_select %p255, %s254, 16
        %s257 = smul.u32 128, %s256
        %s258 = smul.u32 %s257, 4
        %s259 = smul.u32 %s20, 2
        %s260 = sadd.s32 %s259, %s21
        %p261 = scmp.lt.s32.totalorder %s260, 3
        %s262 = scalar_select %p261, %s260, 3
        %s263 = smul.u32 16, %s262
        %s264 = ssub.s32 63, %s263
        %p265 = scmp.lt.s32.totalorder %s264, 16
        %s266 = scalar_select %p265, %s264, 16
        %s267 = smul.u32 128, %s266
        %p268 = scmp.lt.s32.totalorder %s263, 62
        %s269 = scalar_select %p268, %s263, 62
        %s270 = smul.addr %s269, 8
        %s271 = scalar_lea.vmem %s1, %s270
        %s272 = smul.u32 %s20, 2
        %s273 = sadd.s32 %s272, %s21
        %p274 = scmp.lt.s32.totalorder %s273, 3
        %s275 = scalar_select %p274, %s273, 3
        %s276 = smul.u32 16, %s275
        %s277 = ssub.s32 63, %s276
        %p278 = scmp.lt.s32.totalorder %s277, 16
        %s279 = scalar_select %p278, %s277, 16
        %s280 = smul.u32 128, %s279
        %p281 = scmp.eq.s32.totalorder %s21, 0
        // Predicated region
        $region29: #{tpu_custom_call.1} parent=27 // pred_check
          %p282 = pneg %p281
        $region30: #{tpu_custom_call.1} parent=27 // pred_check_branch
          %284 = sbr.rel (%p282) target = $region32
        $region31: #{tpu_custom_call.1} parent=27 // pred_region
          %285 = vst [vmem:[#allocation2] sm:$0xff] 0.0
          %vm286 = vcmask 588800
          %287 = vst.msk [vmem:[#allocation2 + $0x8] sm:$0xff] %vm286, 0.0
          %288 = vst [vmem:[#allocation2 + $0x10] sm:$0xff] 0.0
          %289 = vst.msk [vmem:[#allocation2 + $0x18] sm:$0xff] %vm286, 0.0
          %290 = vst [vmem:[#allocation2 + $0x20] sm:$0xff] 0.0
          %291 = vst.msk [vmem:[#allocation2 + $0x28] sm:$0xff] %vm286, 0.0
          %292 = vst [vmem:[#allocation2 + $0x30] sm:$0xff] 0.0
          %293 = vst.msk [vmem:[#allocation2 + $0x38] sm:$0xff] %vm286, 0.0
        $region32: #{tpu_custom_call.1} parent=27 // pred_fallthru
          _
        %s294 = smul.u32 %s20, 2
        %s295 = sadd.s32 %s294, %s21
        %s296 = smul.u32 %s295, 128
        %s297 = smul.u32 0, 4
        %s298 = smul.addr %s297, 8
        %s299 = scalar_lea.vmem %s248, %s298
        %v300 = vld [vmem:[%s299] sm:$0xff]
        %v301 = vld [vmem:[%s299 + $0x8] sm:$0xff]
        %v302 = vld [vmem:[%s299 + $0x10] sm:$0xff]
        %v303 = vld [vmem:[%s299 + $0x18] sm:$0xff]
        %v304 = vld [vmem:[%s299 + $0x20] sm:$0xff]
        %v305 = vld [vmem:[%s299 + $0x28] sm:$0xff]
        %v306 = vld [vmem:[%s299 + $0x30] sm:$0xff]
        %v307 = vld [vmem:[%s299 + $0x38] sm:$0xff]
        %v308 = vld [vmem:[%s299 + $0x40] sm:$0xff]
        %v309 = vld [vmem:[%s299 + $0x48] sm:$0xff]
        %v310 = vld [vmem:[%s299 + $0x50] sm:$0xff]
        %v311 = vld [vmem:[%s299 + $0x58] sm:$0xff]
        %v312 = vld [vmem:[%s299 + $0x60] sm:$0xff]
        %v313 = vld [vmem:[%s299 + $0x68] sm:$0xff]
        %v314 = vld [vmem:[%s299 + $0x70] sm:$0xff]
        %v315 = vld [vmem:[%s299 + $0x78] sm:$0xff]
        %v316 = vmax.f32 %v300, -4.0
        %v317 = vmax.f32 %v301, -4.0
        %v318 = vmax.f32 %v304, -4.0
        %v319 = vmax.f32 %v305, -4.0
        %v320 = vmax.f32 %v308, -4.0
        %v321 = vmax.f32 %v309, -4.0
        %v322 = vmax.f32 %v312, -4.0
        %v323 = vmax.f32 %v313, -4.0
        %v324 = vmin.f32 %v316, 10.0
        %v325 = vmin.f32 %v317, 10.0
        %v326 = vmin.f32 %v318, 10.0
        %v327 = vmin.f32 %v319, 10.0
        %v328 = vmin.f32 %v320, 10.0
        %v329 = vmin.f32 %v321, 10.0
        %v330 = vmin.f32 %v322, 10.0
        %v331 = vmin.f32 %v323, 10.0
        %v332 = vsub.f32 0.0, %v324
        %v333 = vsub.f32 0.0, %v325
        %v334 = vsub.f32 0.0, %v326
        %v335 = vsub.f32 0.0, %v327
        %v336 = vsub.f32 0.0, %v328
        %v337 = vsub.f32 0.0, %v329
        %v338 = vsub.f32 0.0, %v330
        %v339 = vsub.f32 0.0, %v331
        %v340 = vmul.f32 %v332, 1.442695
        %v341 = vpow.pop %v340
        %v342 = vmul.f32 %v333, 1.442695
        %v343 = vpow.pop %v342
        %v344 = vmul.f32 %v334, 1.442695
        %v345 = vpow.pop %v344
        %v346 = vmul.f32 %v335, 1.442695
        %v347 = vpow.pop %v346
        %v348 = vmul.f32 %v336, 1.442695
        %v349 = vpow.pop %v348
        %v350 = vmul.f32 %v337, 1.442695
        %v351 = vpow.pop %v350
        %v352 = vmul.f32 %v338, 1.442695
        %v353 = vpow.pop %v352
        %v354 = vmul.f32 %v339, 1.442695
        %v355 = vpow.pop %v354
        %v356 = vsub.f32 0.0, %v341
        %v357 = vsub.f32 0.0, %v343
        %v358 = vsub.f32 0.0, %v345
        %v359 = vsub.f32 0.0, %v347
        %v360 = vsub.f32 0.0, %v349
        %v361 = vsub.f32 0.0, %v351
        %v362 = vsub.f32 0.0, %v353
        %v363 = vsub.f32 0.0, %v355
        %v364 = vmul.f32 %v356, 1.442695
        %v365 = vpow.pop %v364
        %v366 = vmul.f32 %v357, 1.442695
        %v367 = vpow.pop %v366
        %v368 = vmul.f32 %v358, 1.442695
        %v369 = vpow.pop %v368
        %v370 = vmul.f32 %v359, 1.442695
        %v371 = vpow.pop %v370
        %v372 = vmul.f32 %v360, 1.442695
        %v373 = vpow.pop %v372
        %v374 = vmul.f32 %v361, 1.442695
        %v375 = vpow.pop %v374
        %v376 = vmul.f32 %v362, 1.442695
        %v377 = vpow.pop %v376
        %v378 = vmul.f32 %v363, 1.442695
        %v379 = vpow.pop %v378
        %v380 = vmax.f32 %v301, -12.0
        %v381 = vmax.f32 %v302, -12.0
        %v382 = vmax.f32 %v303, -12.0
        %v383 = vmax.f32 %v305, -12.0
        %v384 = vmax.f32 %v306, -12.0
        %v385 = vmax.f32 %v307, -12.0
        %v386 = vmax.f32 %v309, -12.0
        %v387 = vmax.f32 %v310, -12.0
        %v388 = vmax.f32 %v311, -12.0
        %v389 = vmax.f32 %v313, -12.0
        %v390 = vmax.f32 %v314, -12.0
        %v391 = vmax.f32 %v315, -12.0
        %v392 = vmin.f32 %v380, 12.0
        %v393 = vmin.f32 %v381, 12.0
        %v394 = vmin.f32 %v382, 12.0
        %v395 = vmin.f32 %v383, 12.0
        %v396 = vmin.f32 %v384, 12.0
        %v397 = vmin.f32 %v385, 12.0
        %v398 = vmin.f32 %v386, 12.0
        %v399 = vmin.f32 %v387, 12.0
        %v400 = vmin.f32 %v388, 12.0
        %v401 = vmin.f32 %v389, 12.0
        %v402 = vmin.f32 %v390, 12.0
        %v403 = vmin.f32 %v391, 12.0
        %v404 = vmul.f32 %v392, 0.5
        %v405 = vmul.f32 %v393, 0.5
        %v406 = vmul.f32 %v394, 0.5
        %v407 = vmul.f32 %v395, 0.5
        %v408 = vmul.f32 %v396, 0.5
        %v409 = vmul.f32 %v397, 0.5
        %v410 = vmul.f32 %v398, 0.5
        %v411 = vmul.f32 %v399, 0.5
        %v412 = vmul.f32 %v400, 0.5
        %v413 = vmul.f32 %v401, 0.5
        %v414 = vmul.f32 %v402, 0.5
        %v415 = vmul.f32 %v403, 0.5
        %v416 = vtanh.pop %v404
        %v417 = vtanh.pop %v405
        %v418 = vtanh.pop %v406
        %v419 = vtanh.pop %v407
        %v420 = vtanh.pop %v408
        %v421 = vtanh.pop %v409
        %v422 = vtanh.pop %v410
        %v423 = vtanh.pop %v411
        %v424 = vtanh.pop %v412
        %v425 = vtanh.pop %v413
        %v426 = vtanh.pop %v414
        %v427 = vtanh.pop %v415
        %v428 = vmul.f32 %v416, 0.5
        %v429 = vmul.f32 %v417, 0.5
        %v430 = vmul.f32 %v418, 0.5
        %v431 = vmul.f32 %v419, 0.5
        %v432 = vmul.f32 %v420, 0.5
        %v433 = vmul.f32 %v421, 0.5
        %v434 = vmul.f32 %v422, 0.5
        %v435 = vmul.f32 %v423, 0.5
        %v436 = vmul.f32 %v424, 0.5
        %v437 = vmul.f32 %v425, 0.5
        %v438 = vmul.f32 %v426, 0.5
        %v439 = vmul.f32 %v427, 0.5
        %v440 = vadd.f32 %v428, 0.5
        %v441 = vadd.f32 %v429, 0.5
        %v442 = vadd.f32 %v430, 0.5
        %v443 = vadd.f32 %v431, 0.5
        %v444 = vadd.f32 %v432, 0.5
        %v445 = vadd.f32 %v433, 0.5
        %v446 = vadd.f32 %v434, 0.5
        %v447 = vadd.f32 %v435, 0.5
        %v448 = vadd.f32 %v436, 0.5
        %v449 = vadd.f32 %v437, 0.5
        %v450 = vadd.f32 %v438, 0.5
        %v451 = vadd.f32 %v439, 0.5
        %v452 = vmul.f32 %v303, 0.5
        %v453 = vmul.f32 %v307, 0.5
        %v454 = vmul.f32 %v311, 0.5
        %v455 = vmul.f32 %v315, 0.5
        %v456 = vtanh.pop %v452
        %v457 = vtanh.pop %v453
        %v458 = vtanh.pop %v454
        %v459 = vtanh.pop %v455
        %v460 = vmul.f32 %v456, 0.5
        %v461 = vmul.f32 %v457, 0.5
        %v462 = vmul.f32 %v458, 0.5
        %v463 = vmul.f32 %v459, 0.5
        %v464 = vadd.f32 %v460, 0.5
        %v465 = vadd.f32 %v461, 0.5
        %v466 = vadd.f32 %v462, 0.5
        %v467 = vadd.f32 %v463, 0.5
        %480 = vrot.lane.b32.xlu0 %v440, 56
        %v481 = vpop.permute.xlu0 %480
        %482 = vrot.lane.b32.xlu0 %v441, 56
        %v483 = vpop.permute.xlu0 %482
        %484 = vrot.lane.b32.xlu0 %v442, 56
        %v485 = vpop.permute.xlu0 %484
        %486 = vrot.lane.b32.xlu0 %v443, 56
        %v487 = vpop.permute.xlu0 %486
        %488 = vrot.lane.b32.xlu0 %v444, 56
        %v489 = vpop.permute.xlu0 %488
        %490 = vrot.lane.b32.xlu0 %v445, 56
        %v491 = vpop.permute.xlu0 %490
        %492 = vrot.lane.b32.xlu0 %v446, 56
        %v493 = vpop.permute.xlu0 %492
        %494 = vrot.lane.b32.xlu0 %v447, 56
        %v495 = vpop.permute.xlu0 %494
        %496 = vrot.lane.b32.xlu0 %v448, 56
        %v497 = vpop.permute.xlu0 %496
        %498 = vrot.lane.b32.xlu0 %v449, 56
        %v499 = vpop.permute.xlu0 %498
        %500 = vrot.lane.b32.xlu0 %v450, 56
        %v501 = vpop.permute.xlu0 %500
        %502 = vrot.lane.b32.xlu0 %v451, 56
        %v503 = vpop.permute.xlu0 %502
        %vm504 = vcmask 457728
        %v505 = vsel %vm504, %v481, %v483
        %v506 = vsel %vm504, %v483, %v485
        %v507 = vsel %vm504, %v487, %v489
        %v508 = vsel %vm504, %v489, %v491
        %v509 = vsel %vm504, %v493, %v495
        %v510 = vsel %vm504, %v495, %v497
        %v511 = vsel %vm504, %v499, %v501
        %v512 = vsel %vm504, %v501, %v503
        %v521 = vsub.f32 %v365, %v505
        %v522 = vsub.f32 %v367, %v506
        %v523 = vsub.f32 %v369, %v507
        %v524 = vsub.f32 %v371, %v508
        %v525 = vsub.f32 %v373, %v509
        %v526 = vsub.f32 %v375, %v510
        %v527 = vsub.f32 %v377, %v511
        %v528 = vsub.f32 %v379, %v512
        %530 = vset.pattern.permute.xlu0 16
        %531 = vperm.xlu0 %530, %v464
        %v532 = vpop.permute.xlu0 %531
        %535 = vset.pattern.permute.xlu0 16
        %536 = vperm.xlu0 %535, %v465
        %v537 = vpop.permute.xlu0 %536
        %540 = vset.pattern.permute.xlu0 16
        %541 = vperm.xlu0 %540, %v466
        %v542 = vpop.permute.xlu0 %541
        %545 = vset.pattern.permute.xlu0 16
        %546 = vperm.xlu0 %545, %v467
        %v547 = vpop.permute.xlu0 %546
        %v549 = vmul.f32 %v532, %v521
        %v550 = vmul.f32 %v532, %v522
        %v551 = vmul.f32 %v537, %v523
        %v552 = vmul.f32 %v537, %v524
        %v553 = vmul.f32 %v542, %v525
        %v554 = vmul.f32 %v542, %v526
        %v555 = vmul.f32 %v547, %v527
        %v556 = vmul.f32 %v547, %v528
        %565 = vrot.lane.b32.xlu0 %v549, 72
        %v566 = vpop.permute.xlu0 %565
        %567 = vrot.lane.b32.xlu0 %v550, 72
        %v568 = vpop.permute.xlu0 %567
        %569 = vrot.lane.b32.xlu0 %v551, 72
        %v570 = vpop.permute.xlu0 %569
        %571 = vrot.lane.b32.xlu0 %v552, 72
        %v572 = vpop.permute.xlu0 %571
        %573 = vrot.lane.b32.xlu0 %v553, 72
        %v574 = vpop.permute.xlu0 %573
        %575 = vrot.lane.b32.xlu0 %v554, 72
        %v576 = vpop.permute.xlu0 %575
        %577 = vrot.lane.b32.xlu0 %v555, 72
        %v578 = vpop.permute.xlu0 %577
        %579 = vrot.lane.b32.xlu0 %v556, 72
        %v580 = vpop.permute.xlu0 %579
        %vm581 = vcmask 588800
        %v582 = vsel %vm581, %v566, %v568
        %v583 = vsel %vm581, %v570, %v572
        %v584 = vsel %vm581, %v574, %v576
        %v585 = vsel %vm581, %v578, %v580
        %v598 = vadd.f32 %v440, %v566
        %v599 = vadd.f32 %v441, %v582
        %v600 = vadd.f32 %v442, %v568
        %v601 = vadd.f32 %v443, %v570
        %v602 = vadd.f32 %v444, %v583
        %v603 = vadd.f32 %v445, %v572
        %v604 = vadd.f32 %v446, %v574
        %v605 = vadd.f32 %v447, %v584
        %v606 = vadd.f32 %v448, %v576
        %v607 = vadd.f32 %v449, %v578
        %v608 = vadd.f32 %v450, %v585
        %v609 = vadd.f32 %v451, %v580
        %v610 = vld [vmem:[%s271] sm:$0xff]
        %v611 = vld [vmem:[%s271 + $0x8] sm:$0xff]
        %v612 = vld [vmem:[%s271 + $0x10] sm:$0xff]
        %v613 = vld [vmem:[%s271 + $0x18] sm:$0xff]
        %v614 = vlaneseq
        %v615 = vand.u32 %v614, 127
        %v616 = vadd.s32 %v615, 128
        %617 = vset.pattern.permute.xlu0 0
        %618 = vperm.xlu0 %617, %v610
        %v619 = vpop.permute.xlu0 %618
        %620 = vset.pattern.permute.xlu0 0
        %621 = vperm.xlu0 %620, %v611
        %v622 = vpop.permute.xlu0 %621
        %623 = vset.pattern.permute.xlu0 0
        %624 = vperm.xlu0 %623, %v612
        %v625 = vpop.permute.xlu0 %624
        %626 = vset.pattern.permute.xlu0 0
        %627 = vperm.xlu0 %626, %v613
        %v628 = vpop.permute.xlu0 %627
        %vm629 = vcmp.eq.s32.totalorder %v615, %v619
        %vm630 = vcmp.eq.s32.totalorder %v616, %v619
        %vm631 = vcmp.eq.s32.totalorder %v615, %v622
        %vm632 = vcmp.eq.s32.totalorder %v616, %v622
        %vm633 = vcmp.eq.s32.totalorder %v615, %v625
        %vm634 = vcmp.eq.s32.totalorder %v616, %v625
        %vm635 = vcmp.eq.s32.totalorder %v615, %v628
        %vm636 = vcmp.eq.s32.totalorder %v616, %v628
        %v637 = vsub.f32 1.0, %v598
        %v638 = vsub.f32 1.0, %v599
        %v639 = vsub.f32 1.0, %v600
        %v640 = vsub.f32 1.0, %v601
        %v641 = vsub.f32 1.0, %v602
        %v642 = vsub.f32 1.0, %v603
        %v643 = vsub.f32 1.0, %v604
        %v644 = vsub.f32 1.0, %v605
        %v645 = vsub.f32 1.0, %v606
        %v646 = vsub.f32 1.0, %v607
        %v647 = vsub.f32 1.0, %v608
        %v648 = vsub.f32 1.0, %v609
        %661 = vrot.lane.b32.xlu0 %v598, 56
        %v662 = vpop.permute.xlu0 %661
        %663 = vrot.lane.b32.xlu0 %v599, 56
        %v664 = vpop.permute.xlu0 %663
        %665 = vrot.lane.b32.xlu0 %v600, 56
        %v666 = vpop.permute.xlu0 %665
        %667 = vrot.lane.b32.xlu0 %v601, 56
        %v668 = vpop.permute.xlu0 %667
        %669 = vrot.lane.b32.xlu0 %v602, 56
        %v670 = vpop.permute.xlu0 %669
        %671 = vrot.lane.b32.xlu0 %v603, 56
        %v672 = vpop.permute.xlu0 %671
        %673 = vrot.lane.b32.xlu0 %v604, 56
        %v674 = vpop.permute.xlu0 %673
        %675 = vrot.lane.b32.xlu0 %v605, 56
        %v676 = vpop.permute.xlu0 %675
        %677 = vrot.lane.b32.xlu0 %v606, 56
        %v678 = vpop.permute.xlu0 %677
        %679 = vrot.lane.b32.xlu0 %v607, 56
        %v680 = vpop.permute.xlu0 %679
        %681 = vrot.lane.b32.xlu0 %v608, 56
        %v682 = vpop.permute.xlu0 %681
        %683 = vrot.lane.b32.xlu0 %v609, 56
        %v684 = vpop.permute.xlu0 %683
        %v685 = vsel %vm504, %v662, %v664
        %v686 = vsel %vm504, %v664, %v666
        %v687 = vsel %vm504, %v668, %v670
        %v688 = vsel %vm504, %v670, %v672
        %v689 = vsel %vm504, %v674, %v676
        %v690 = vsel %vm504, %v676, %v678
        %v691 = vsel %vm504, %v680, %v682
        %v692 = vsel %vm504, %v682, %v684
        %713 = vrot.lane.b32.xlu0 %v637, 56
        %v714 = vpop.permute.xlu0 %713
        %715 = vrot.lane.b32.xlu0 %v638, 56
        %v716 = vpop.permute.xlu0 %715
        %717 = vrot.lane.b32.xlu0 %v639, 56
        %v718 = vpop.permute.xlu0 %717
        %719 = vrot.lane.b32.xlu0 %v640, 56
        %v720 = vpop.permute.xlu0 %719
        %721 = vrot.lane.b32.xlu0 %v641, 56
        %v722 = vpop.permute.xlu0 %721
        %723 = vrot.lane.b32.xlu0 %v642, 56
        %v724 = vpop.permute.xlu0 %723
        %725 = vrot.lane.b32.xlu0 %v643, 56
        %v726 = vpop.permute.xlu0 %725
        %727 = vrot.lane.b32.xlu0 %v644, 56
        %v728 = vpop.permute.xlu0 %727
        %729 = vrot.lane.b32.xlu0 %v645, 56
        %v730 = vpop.permute.xlu0 %729
        %731 = vrot.lane.b32.xlu0 %v646, 56
        %v732 = vpop.permute.xlu0 %731
        %733 = vrot.lane.b32.xlu0 %v647, 56
        %v734 = vpop.permute.xlu0 %733
        %735 = vrot.lane.b32.xlu0 %v648, 56
        %v736 = vpop.permute.xlu0 %735
        %v737 = vsel %vm504, %v714, %v716
        %v738 = vsel %vm504, %v716, %v718
        %v739 = vsel %vm504, %v720, %v722
        %v740 = vsel %vm504, %v722, %v724
        %v741 = vsel %vm504, %v726, %v728
        %v742 = vsel %vm504, %v728, %v730
        %v743 = vsel %vm504, %v732, %v734
        %v744 = vsel %vm504, %v734, %v736
        %v753 = vsel %vm629, %v685, %v737
        %v754 = vsel %vm630, %v686, %v738
        %v755 = vsel %vm631, %v687, %v739
        %v756 = vsel %vm632, %v688, %v740
        %v757 = vsel %vm633, %v689, %v741
        %v758 = vsel %vm634, %v690, %v742
        %v759 = vsel %vm635, %v691, %v743
        %v760 = vsel %vm636, %v692, %v744
        %v761 = vlog2.pop %v753
        %v762 = vmul.f32 %v761, 0.6931472
        %v763 = vlog2.pop %v754
        %v764 = vmul.f32 %v763, 0.6931472
        %v765 = vlog2.pop %v755
        %v766 = vmul.f32 %v765, 0.6931472
        %v767 = vlog2.pop %v756
        %v768 = vmul.f32 %v767, 0.6931472
        %v769 = vlog2.pop %v757
        %v770 = vmul.f32 %v769, 0.6931472
        %v771 = vlog2.pop %v758
        %v772 = vmul.f32 %v771, 0.6931472
        %v773 = vlog2.pop %v759
        %v774 = vmul.f32 %v773, 0.6931472
        %v775 = vlog2.pop %v760
        %v776 = vmul.f32 %v775, 0.6931472
        %v777 = vmax.f32 %v762, -100.0
        %v778 = vmax.f32 %v764, -100.0
        %v779 = vmax.f32 %v766, -100.0
        %v780 = vmax.f32 %v768, -100.0
        %v781 = vmax.f32 %v770, -100.0
        %v782 = vmax.f32 %v772, -100.0
        %v783 = vmax.f32 %v774, -100.0
        %v784 = vmax.f32 %v776, -100.0
        %v785 = vsub.f32 0.0, %v777
        %v786 = vsub.f32 0.0, %v778
        %v787 = vsub.f32 0.0, %v779
        %v788 = vsub.f32 0.0, %v780
        %v789 = vsub.f32 0.0, %v781
        %v790 = vsub.f32 0.0, %v782
        %v791 = vsub.f32 0.0, %v783
        %v792 = vsub.f32 0.0, %v784
        %s793 = sadd.s32 %s296, 0
        %v794 = vlaneseq
        %v795 = vshrl.u32 %v794, 7
        %v796 = vadd.s32 %v795, 8
        %v797 = vadd.s32 %v795, 16
        %v798 = vadd.s32 %v795, 24
        %v799 = vstv %s793
        %v800 = vadd.s32 %v799, %v795
        %v801 = vadd.s32 %v799, %v796
        %v802 = vadd.s32 %v799, %v797
        %v803 = vadd.s32 %v799, %v798
        %vm804 = vcmp.lt.s32.totalorder %v800, 500
        %vm805 = vcmp.lt.s32.totalorder %v801, 500
        %vm806 = vcmp.lt.s32.totalorder %v802, 500
        %vm807 = vcmp.lt.s32.totalorder %v803, 500
        %v808 = vsel %vm804, 1, 0
        %v809 = vsel %vm805, 1, 0
        %v810 = vsel %vm806, 1, 0
        %v811 = vsel %vm807, 1, 0
        %vm812 = vcmp.eq.s32.totalorder %v808, 1
        %vm813 = vcmp.eq.s32.totalorder %v809, 1
        %vm814 = vcmp.eq.s32.totalorder %v810, 1
        %vm815 = vcmp.eq.s32.totalorder %v811, 1
        %v816 = vsel %vm812, %v785, 0.0
        %v817 = vsel %vm812, %v786, 0.0
        %v818 = vsel %vm813, %v787, 0.0
        %v819 = vsel %vm813, %v788, 0.0
        %v820 = vsel %vm814, %v789, 0.0
        %v821 = vsel %vm814, %v790, 0.0
        %v822 = vsel %vm815, %v791, 0.0
        %v823 = vsel %vm815, %v792, 0.0
        %v824 = vld [vmem:[#allocation2] sm:$0xff]
        %v825 = vld [vmem:[#allocation2 + $0x8] sm:$0xff]
        %v826 = vld [vmem:[#allocation2 + $0x10] sm:$0xff]
        %v827 = vld [vmem:[#allocation2 + $0x18] sm:$0xff]
        %v828 = vld [vmem:[#allocation2 + $0x20] sm:$0xff]
        %v829 = vld [vmem:[#allocation2 + $0x28] sm:$0xff]
        %v830 = vld [vmem:[#allocation2 + $0x30] sm:$0xff]
        %v831 = vld [vmem:[#allocation2 + $0x38] sm:$0xff]
        %v832 = vadd.f32 %v824, %v816
        %v833 = vadd.f32 %v825, %v817
        %v834 = vadd.f32 %v826, %v818
        %v835 = vadd.f32 %v827, %v819
        %v836 = vadd.f32 %v828, %v820
        %v837 = vadd.f32 %v829, %v821
        %v838 = vadd.f32 %v830, %v822
        %v839 = vadd.f32 %v831, %v823
        %840 = vst [vmem:[#allocation2] sm:$0xff] %v832
        %841 = vst.msk [vmem:[#allocation2 + $0x8] sm:$0xff] %vm581, %v833
        %842 = vst [vmem:[#allocation2 + $0x10] sm:$0xff] %v834
        %843 = vst.msk [vmem:[#allocation2 + $0x18] sm:$0xff] %vm581, %v835
        %844 = vst [vmem:[#allocation2 + $0x20] sm:$0xff] %v836
        %845 = vst.msk [vmem:[#allocation2 + $0x28] sm:$0xff] %vm581, %v837
        %846 = vst [vmem:[#allocation2 + $0x30] sm:$0xff] %v838
        %847 = vst.msk [vmem:[#allocation2 + $0x38] sm:$0xff] %vm581, %v839
        %s848 = smul.u32 4, 4
        %s849 = smul.addr %s848, 8
        %s850 = scalar_lea.vmem %s248, %s849
        %v851 = vld [vmem:[%s850] sm:$0xff]
        %v852 = vld [vmem:[%s850 + $0x8] sm:$0xff]
        %v853 = vld [vmem:[%s850 + $0x10] sm:$0xff]
        %v854 = vld [vmem:[%s850 + $0x18] sm:$0xff]
        %v855 = vld [vmem:[%s850 + $0x20] sm:$0xff]
        %v856 = vld [vmem:[%s850 + $0x28] sm:$0xff]
        %v857 = vld [vmem:[%s850 + $0x30] sm:$0xff]
        %v858 = vld [vmem:[%s850 + $0x38] sm:$0xff]
        %v859 = vld [vmem:[%s850 + $0x40] sm:$0xff]
        %v860 = vld [vmem:[%s850 + $0x48] sm:$0xff]
        %v861 = vld [vmem:[%s850 + $0x50] sm:$0xff]
        %v862 = vld [vmem:[%s850 + $0x58] sm:$0xff]
        %v863 = vld [vmem:[%s850 + $0x60] sm:$0xff]
        %v864 = vld [vmem:[%s850 + $0x68] sm:$0xff]
        %v865 = vld [vmem:[%s850 + $0x70] sm:$0xff]
        %v866 = vld [vmem:[%s850 + $0x78] sm:$0xff]
        %v867 = vmax.f32 %v851, -4.0
        %v868 = vmax.f32 %v852, -4.0
        %v869 = vmax.f32 %v855, -4.0
        %v870 = vmax.f32 %v856, -4.0
        %v871 = vmax.f32 %v859, -4.0
        %v872 = vmax.f32 %v860, -4.0
        %v873 = vmax.f32 %v863, -4.0
        %v874 = vmax.f32 %v864, -4.0
        %v875 = vmin.f32 %v867, 10.0
        %v876 = vmin.f32 %v868, 10.0
        %v877 = vmin.f32 %v869, 10.0
        %v878 = vmin.f32 %v870, 10.0
        %v879 = vmin.f32 %v871, 10.0
        %v880 = vmin.f32 %v872, 10.0
        %v881 = vmin.f32 %v873, 10.0
        %v882 = vmin.f32 %v874, 10.0
        %v883 = vsub.f32 0.0, %v875
        %v884 = vsub.f32 0.0, %v876
        %v885 = vsub.f32 0.0, %v877
        %v886 = vsub.f32 0.0, %v878
        %v887 = vsub.f32 0.0, %v879
        %v888 = vsub.f32 0.0, %v880
        %v889 = vsub.f32 0.0, %v881
        %v890 = vsub.f32 0.0, %v882
        %v891 = vmul.f32 %v883, 1.442695
        %v892 = vpow.pop %v891
        %v893 = vmul.f32 %v884, 1.442695
        %v894 = vpow.pop %v893
        %v895 = vmul.f32 %v885, 1.442695
        %v896 = vpow.pop %v895
        %v897 = vmul.f32 %v886, 1.442695
        %v898 = vpow.pop %v897
        %v899 = vmul.f32 %v887, 1.442695
        %v900 = vpow.pop %v899
        %v901 = vmul.f32 %v888, 1.442695
        %v902 = vpow.pop %v901
        %v903 = vmul.f32 %v889, 1.442695
        %v904 = vpow.pop %v903
        %v905 = vmul.f32 %v890, 1.442695
        %v906 = vpow.pop %v905
        %v907 = vsub.f32 0.0, %v892
        %v908 = vsub.f32 0.0, %v894
        %v909 = vsub.f32 0.0, %v896
        %v910 = vsub.f32 0.0, %v898
        %v911 = vsub.f32 0.0, %v900
        %v912 = vsub.f32 0.0, %v902
        %v913 = vsub.f32 0.0, %v904
        %v914 = vsub.f32 0.0, %v906
        %v915 = vmul.f32 %v907, 1.442695
        %v916 = vpow.pop %v915
        %v917 = vmul.f32 %v908, 1.442695
        %v918 = vpow.pop %v917
        %v919 = vmul.f32 %v909, 1.442695
        %v920 = vpow.pop %v919
        %v921 = vmul.f32 %v910, 1.442695
        %v922 = vpow.pop %v921
        %v923 = vmul.f32 %v911, 1.442695
        %v924 = vpow.pop %v923
        %v925 = vmul.f32 %v912, 1.442695
        %v926 = vpow.pop %v925
        %v927 = vmul.f32 %v913, 1.442695
        %v928 = vpow.pop %v927
        %v929 = vmul.f32 %v914, 1.442695
        %v930 = vpow.pop %v929
        %v931 = vmax.f32 %v852, -12.0
        %v932 = vmax.f32 %v853, -12.0
        %v933 = vmax.f32 %v854, -12.0
        %v934 = vmax.f32 %v856, -12.0
        %v935 = vmax.f32 %v857, -12.0
        %v936 = vmax.f32 %v858, -12.0
        %v937 = vmax.f32 %v860, -12.0
        %v938 = vmax.f32 %v861, -12.0
        %v939 = vmax.f32 %v862, -12.0
        %v940 = vmax.f32 %v864, -12.0
        %v941 = vmax.f32 %v865, -12.0
        %v942 = vmax.f32 %v866, -12.0
        %v943 = vmin.f32 %v931, 12.0
        %v944 = vmin.f32 %v932, 12.0
        %v945 = vmin.f32 %v933, 12.0
        %v946 = vmin.f32 %v934, 12.0
        %v947 = vmin.f32 %v935, 12.0
        %v948 = vmin.f32 %v936, 12.0
        %v949 = vmin.f32 %v937, 12.0
        %v950 = vmin.f32 %v938, 12.0
        %v951 = vmin.f32 %v939, 12.0
        %v952 = vmin.f32 %v940, 12.0
        %v953 = vmin.f32 %v941, 12.0
        %v954 = vmin.f32 %v942, 12.0
        %v955 = vmul.f32 %v943, 0.5
        %v956 = vmul.f32 %v944, 0.5
        %v957 = vmul.f32 %v945, 0.5
        %v958 = vmul.f32 %v946, 0.5
        %v959 = vmul.f32 %v947, 0.5
        %v960 = vmul.f32 %v948, 0.5
        %v961 = vmul.f32 %v949, 0.5
        %v962 = vmul.f32 %v950, 0.5
        %v963 = vmul.f32 %v951, 0.5
        %v964 = vmul.f32 %v952, 0.5
        %v965 = vmul.f32 %v953, 0.5
        %v966 = vmul.f32 %v954, 0.5
        %v967 = vtanh.pop %v955
        %v968 = vtanh.pop %v956
        %v969 = vtanh.pop %v957
        %v970 = vtanh.pop %v958
        %v971 = vtanh.pop %v959
        %v972 = vtanh.pop %v960
        %v973 = vtanh.pop %v961
        %v974 = vtanh.pop %v962
        %v975 = vtanh.pop %v963
        %v976 = vtanh.pop %v964
        %v977 = vtanh.pop %v965
        %v978 = vtanh.pop %v966
        %v979 = vmul.f32 %v967, 0.5
        %v980 = vmul.f32 %v968, 0.5
        %v981 = vmul.f32 %v969, 0.5
        %v982 = vmul.f32 %v970, 0.5
        %v983 = vmul.f32 %v971, 0.5
        %v984 = vmul.f32 %v972, 0.5
        %v985 = vmul.f32 %v973, 0.5
        %v986 = vmul.f32 %v974, 0.5
        %v987 = vmul.f32 %v975, 0.5
        %v988 = vmul.f32 %v976, 0.5
        %v989 = vmul.f32 %v977, 0.5
        %v990 = vmul.f32 %v978, 0.5
        %v991 = vadd.f32 %v979, 0.5
        %v992 = vadd.f32 %v980, 0.5
        %v993 = vadd.f32 %v981, 0.5
        %v994 = vadd.f32 %v982, 0.5
        %v995 = vadd.f32 %v983, 0.5
        %v996 = vadd.f32 %v984, 0.5
        %v997 = vadd.f32 %v985, 0.5
        %v998 = vadd.f32 %v986, 0.5
        %v999 = vadd.f32 %v987, 0.5
        %v1000 = vadd.f32 %v988, 0.5
        %v1001 = vadd.f32 %v989, 0.5
        %v1002 = vadd.f32 %v990, 0.5
        %v1003 = vmul.f32 %v854, 0.5
        %v1004 = vmul.f32 %v858, 0.5
        %v1005 = vmul.f32 %v862, 0.5
        %v1006 = vmul.f32 %v866, 0.5
        %v1007 = vtanh.pop %v1003
        %v1008 = vtanh.pop %v1004
        %v1009 = vtanh.pop %v1005
        %v1010 = vtanh.pop %v1006
        %v1011 = vmul.f32 %v1007, 0.5
        %v1012 = vmul.f32 %v1008, 0.5
        %v1013 = vmul.f32 %v1009, 0.5
        %v1014 = vmul.f32 %v1010, 0.5
        %v1015 = vadd.f32 %v1011, 0.5
        %v1016 = vadd.f32 %v1012, 0.5
        %v1017 = vadd.f32 %v1013, 0.5
        %v1018 = vadd.f32 %v1014, 0.5
        %1031 = vrot.lane.b32.xlu0 %v991, 56
        %v1032 = vpop.permute.xlu0 %1031
        %1033 = vrot.lane.b32.xlu0 %v992, 56
        %v1034 = vpop.permute.xlu0 %1033
        %1035 = vrot.lane.b32.xlu0 %v993, 56
        %v1036 = vpop.permute.xlu0 %1035
        %1037 = vrot.lane.b32.xlu0 %v994, 56
        %v1038 = vpop.permute.xlu0 %1037
        %1039 = vrot.lane.b32.xlu0 %v995, 56
        %v1040 = vpop.permute.xlu0 %1039
        %1041 = vrot.lane.b32.xlu0 %v996, 56
        %v1042 = vpop.permute.xlu0 %1041
        %1043 = vrot.lane.b32.xlu0 %v997, 56
        %v1044 = vpop.permute.xlu0 %1043
        %1045 = vrot.lane.b32.xlu0 %v998, 56
        %v1046 = vpop.permute.xlu0 %1045
        %1047 = vrot.lane.b32.xlu0 %v999, 56
        %v1048 = vpop.permute.xlu0 %1047
        %1049 = vrot.lane.b32.xlu0 %v1000, 56
        %v1050 = vpop.permute.xlu0 %1049
        %1051 = vrot.lane.b32.xlu0 %v1001, 56
        %v1052 = vpop.permute.xlu0 %1051
        %1053 = vrot.lane.b32.xlu0 %v1002, 56
        %v1054 = vpop.permute.xlu0 %1053
        %v1055 = vsel %vm504, %v1032, %v1034
        %v1056 = vsel %vm504, %v1034, %v1036
        %v1057 = vsel %vm504, %v1038, %v1040
        %v1058 = vsel %vm504, %v1040, %v1042
        %v1059 = vsel %vm504, %v1044, %v1046
        %v1060 = vsel %vm504, %v1046, %v1048
        %v1061 = vsel %vm504, %v1050, %v1052
        %v1062 = vsel %vm504, %v1052, %v1054
        %v1071 = vsub.f32 %v916, %v1055
        %v1072 = vsub.f32 %v918, %v1056
        %v1073 = vsub.f32 %v920, %v1057
        %v1074 = vsub.f32 %v922, %v1058
        %v1075 = vsub.f32 %v924, %v1059
        %v1076 = vsub.f32 %v926, %v1060
        %v1077 = vsub.f32 %v928, %v1061
        %v1078 = vsub.f32 %v930, %v1062
        %1080 = vset.pattern.permute.xlu0 16
        %1081 = vperm.xlu0 %1080, %v1015
        %v1082 = vpop.permute.xlu0 %1081
        %1085 = vset.pattern.permute.xlu0 16
        %1086 = vperm.xlu0 %1085, %v1016
        %v1087 = vpop.permute.xlu0 %1086
        %1090 = vset.pattern.permute.xlu0 16
        %1091 = vperm.xlu0 %1090, %v1017
        %v1092 = vpop.permute.xlu0 %1091
        %1095 = vset.pattern.permute.xlu0 16
        %1096 = vperm.xlu0 %1095, %v1018
        %v1097 = vpop.permute.xlu0 %1096
        %v1099 = vmul.f32 %v1082, %v1071
        %v1100 = vmul.f32 %v1082, %v1072
        %v1101 = vmul.f32 %v1087, %v1073
        %v1102 = vmul.f32 %v1087, %v1074
        %v1103 = vmul.f32 %v1092, %v1075
        %v1104 = vmul.f32 %v1092, %v1076
        %v1105 = vmul.f32 %v1097, %v1077
        %v1106 = vmul.f32 %v1097, %v1078
        %1115 = vrot.lane.b32.xlu0 %v1099, 72
        %v1116 = vpop.permute.xlu0 %1115
        %1117 = vrot.lane.b32.xlu0 %v1100, 72
        %v1118 = vpop.permute.xlu0 %1117
        %1119 = vrot.lane.b32.xlu0 %v1101, 72
        %v1120 = vpop.permute.xlu0 %1119
        %1121 = vrot.lane.b32.xlu0 %v1102, 72
        %v1122 = vpop.permute.xlu0 %1121
        %1123 = vrot.lane.b32.xlu0 %v1103, 72
        %v1124 = vpop.permute.xlu0 %1123
        %1125 = vrot.lane.b32.xlu0 %v1104, 72
        %v1126 = vpop.permute.xlu0 %1125
        %1127 = vrot.lane.b32.xlu0 %v1105, 72
        %v1128 = vpop.permute.xlu0 %1127
        %1129 = vrot.lane.b32.xlu0 %v1106, 72
        %v1130 = vpop.permute.xlu0 %1129
        %v1131 = vsel %vm581, %v1116, %v1118
        %v1132 = vsel %vm581, %v1120, %v1122
        %v1133 = vsel %vm581, %v1124, %v1126
        %v1134 = vsel %vm581, %v1128, %v1130
        %v1147 = vadd.f32 %v991, %v1116
        %v1148 = vadd.f32 %v992, %v1131
        %v1149 = vadd.f32 %v993, %v1118
        %v1150 = vadd.f32 %v994, %v1120
        %v1151 = vadd.f32 %v995, %v1132
        %v1152 = vadd.f32 %v996, %v1122
        %v1153 = vadd.f32 %v997, %v1124
        %v1154 = vadd.f32 %v998, %v1133
        %v1155 = vadd.f32 %v999, %v1126
        %v1156 = vadd.f32 %v1000, %v1128
        %v1157 = vadd.f32 %v1001, %v1134
        %v1158 = vadd.f32 %v1002, %v1130
        %s1159 = scalar_lea.vmem %s271, 32
        %v1160 = vld [vmem:[%s1159] sm:$0xff]
        %v1161 = vld [vmem:[%s1159 + $0x8] sm:$0xff]
        %v1162 = vld [vmem:[%s1159 + $0x10] sm:$0xff]
        %v1163 = vld [vmem:[%s1159 + $0x18] sm:$0xff]
        %1164 = vset.pattern.permute.xlu0 0
        %1165 = vperm.xlu0 %1164, %v1160
        %v1166 = vpop.permute.xlu0 %1165
        %1167 = vset.pattern.permute.xlu0 0
        %1168 = vperm.xlu0 %1167, %v1161
        %v1169 = vpop.permute.xlu0 %1168
        %1170 = vset.pattern.permute.xlu0 0
        %1171 = vperm.xlu0 %1170, %v1162
        %v1172 = vpop.permute.xlu0 %1171
        %1173 = vset.pattern.permute.xlu0 0
        %1174 = vperm.xlu0 %1173, %v1163
        %v1175 = vpop.permute.xlu0 %1174
        %vm1176 = vcmp.eq.s32.totalorder %v615, %v1166
        %vm1177 = vcmp.eq.s32.totalorder %v616, %v1166
        %vm1178 = vcmp.eq.s32.totalorder %v615, %v1169
        %vm1179 = vcmp.eq.s32.totalorder %v616, %v1169
        %vm1180 = vcmp.eq.s32.totalorder %v615, %v1172
        %vm1181 = vcmp.eq.s32.totalorder %v616, %v1172
        %vm1182 = vcmp.eq.s32.totalorder %v615, %v1175
        %vm1183 = vcmp.eq.s32.totalorder %v616, %v1175
        %v1184 = vsub.f32 1.0, %v1147
        %v1185 = vsub.f32 1.0, %v1148
        %v1186 = vsub.f32 1.0, %v1149
        %v1187 = vsub.f32 1.0, %v1150
        %v1188 = vsub.f32 1.0, %v1151
        %v1189 = vsub.f32 1.0, %v1152
        %v1190 = vsub.f32 1.0, %v1153
        %v1191 = vsub.f32 1.0, %v1154
        %v1192 = vsub.f32 1.0, %v1155
        %v1193 = vsub.f32 1.0, %v1156
        %v1194 = vsub.f32 1.0, %v1157
        %v1195 = vsub.f32 1.0, %v1158
        %1208 = vrot.lane.b32.xlu0 %v1147, 56
        %v1209 = vpop.permute.xlu0 %1208
        %1210 = vrot.lane.b32.xlu0 %v1148, 56
        %v1211 = vpop.permute.xlu0 %1210
        %1212 = vrot.lane.b32.xlu0 %v1149, 56
        %v1213 = vpop.permute.xlu0 %1212
        %1214 = vrot.lane.b32.xlu0 %v1150, 56
        %v1215 = vpop.permute.xlu0 %1214
        %1216 = vrot.lane.b32.xlu0 %v1151, 56
        %v1217 = vpop.permute.xlu0 %1216
        %1218 = vrot.lane.b32.xlu0 %v1152, 56
        %v1219 = vpop.permute.xlu0 %1218
        %1220 = vrot.lane.b32.xlu0 %v1153, 56
        %v1221 = vpop.permute.xlu0 %1220
        %1222 = vrot.lane.b32.xlu0 %v1154, 56
        %v1223 = vpop.permute.xlu0 %1222
        %1224 = vrot.lane.b32.xlu0 %v1155, 56
        %v1225 = vpop.permute.xlu0 %1224
        %1226 = vrot.lane.b32.xlu0 %v1156, 56
        %v1227 = vpop.permute.xlu0 %1226
        %1228 = vrot.lane.b32.xlu0 %v1157, 56
        %v1229 = vpop.permute.xlu0 %1228
        %1230 = vrot.lane.b32.xlu0 %v1158, 56
        %v1231 = vpop.permute.xlu0 %1230
        %v1232 = vsel %vm504, %v1209, %v1211
        %v1233 = vsel %vm504, %v1211, %v1213
        %v1234 = vsel %vm504, %v1215, %v1217
        %v1235 = vsel %vm504, %v1217, %v1219
        %v1236 = vsel %vm504, %v1221, %v1223
        %v1237 = vsel %vm504, %v1223, %v1225
        %v1238 = vsel %vm504, %v1227, %v1229
        %v1239 = vsel %vm504, %v1229, %v1231
        %1260 = vrot.lane.b32.xlu0 %v1184, 56
        %v1261 = vpop.permute.xlu0 %1260
        %1262 = vrot.lane.b32.xlu0 %v1185, 56
        %v1263 = vpop.permute.xlu0 %1262
        %1264 = vrot.lane.b32.xlu0 %v1186, 56
        %v1265 = vpop.permute.xlu0 %1264
        %1266 = vrot.lane.b32.xlu0 %v1187, 56
        %v1267 = vpop.permute.xlu0 %1266
        %1268 = vrot.lane.b32.xlu0 %v1188, 56
        %v1269 = vpop.permute.xlu0 %1268
        %1270 = vrot.lane.b32.xlu0 %v1189, 56
        %v1271 = vpop.permute.xlu0 %1270
        %1272 = vrot.lane.b32.xlu0 %v1190, 56
        %v1273 = vpop.permute.xlu0 %1272
        %1274 = vrot.lane.b32.xlu0 %v1191, 56
        %v1275 = vpop.permute.xlu0 %1274
        %1276 = vrot.lane.b32.xlu0 %v1192, 56
        %v1277 = vpop.permute.xlu0 %1276
        %1278 = vrot.lane.b32.xlu0 %v1193, 56
        %v1279 = vpop.permute.xlu0 %1278
        %1280 = vrot.lane.b32.xlu0 %v1194, 56
        %v1281 = vpop.permute.xlu0 %1280
        %1282 = vrot.lane.b32.xlu0 %v1195, 56
        %v1283 = vpop.permute.xlu0 %1282
        %v1284 = vsel %vm504, %v1261, %v1263
        %v1285 = vsel %vm504, %v1263, %v1265
        %v1286 = vsel %vm504, %v1267, %v1269
        %v1287 = vsel %vm504, %v1269, %v1271
        %v1288 = vsel %vm504, %v1273, %v1275
        %v1289 = vsel %vm504, %v1275, %v1277
        %v1290 = vsel %vm504, %v1279, %v1281
        %v1291 = vsel %vm504, %v1281, %v1283
        %v1300 = vsel %vm1176, %v1232, %v1284
        %v1301 = vsel %vm1177, %v1233, %v1285
        %v1302 = vsel %vm1178, %v1234, %v1286
        %v1303 = vsel %vm1179, %v1235, %v1287
        %v1304 = vsel %vm1180, %v1236, %v1288
        %v1305 = vsel %vm1181, %v1237, %v1289
        %v1306 = vsel %vm1182, %v1238, %v1290
        %v1307 = vsel %vm1183, %v1239, %v1291
        %v1308 = vlog2.pop %v1300
        %v1309 = vmul.f32 %v1308, 0.6931472
        %v1310 = vlog2.pop %v1301
        %v1311 = vmul.f32 %v1310, 0.6931472
        %v1312 = vlog2.pop %v1302
        %v1313 = vmul.f32 %v1312, 0.6931472
        %v1314 = vlog2.pop %v1303
        %v1315 = vmul.f32 %v1314, 0.6931472
        %v1316 = vlog2.pop %v1304
        %v1317 = vmul.f32 %v1316, 0.6931472
        %v1318 = vlog2.pop %v1305
        %v1319 = vmul.f32 %v1318, 0.6931472
        %v1320 = vlog2.pop %v1306
        %v1321 = vmul.f32 %v1320, 0.6931472
        %v1322 = vlog2.pop %v1307
        %v1323 = vmul.f32 %v1322, 0.6931472
        %v1324 = vmax.f32 %v1309, -100.0
        %v1325 = vmax.f32 %v1311, -100.0
        %v1326 = vmax.f32 %v1313, -100.0
        %v1327 = vmax.f32 %v1315, -100.0
        %v1328 = vmax.f32 %v1317, -100.0
        %v1329 = vmax.f32 %v1319, -100.0
        %v1330 = vmax.f32 %v1321, -100.0
        %v1331 = vmax.f32 %v1323, -100.0
        %v1332 = vsub.f32 0.0, %v1324
        %v1333 = vsub.f32 0.0, %v1325
        %v1334 = vsub.f32 0.0, %v1326
        %v1335 = vsub.f32 0.0, %v1327
        %v1336 = vsub.f32 0.0, %v1328
        %v1337 = vsub.f32 0.0, %v1329
        %v1338 = vsub.f32 0.0, %v1330
        %v1339 = vsub.f32 0.0, %v1331
        %s1340 = sadd.s32 %s296, 32
        %v1341 = vstv %s1340
        %v1342 = vadd.s32 %v1341, %v795
        %v1343 = vadd.s32 %v1341, %v796
        %v1344 = vadd.s32 %v1341, %v797
        %v1345 = vadd.s32 %v1341, %v798
        %vm1346 = vcmp.lt.s32.totalorder %v1342, 500
        %vm1347 = vcmp.lt.s32.totalorder %v1343, 500
        %vm1348 = vcmp.lt.s32.totalorder %v1344, 500
        %vm1349 = vcmp.lt.s32.totalorder %v1345, 500
        %v1350 = vsel %vm1346, 1, 0
        %v1351 = vsel %vm1347, 1, 0
        %v1352 = vsel %vm1348, 1, 0
        %v1353 = vsel %vm1349, 1, 0
        %vm1354 = vcmp.eq.s32.totalorder %v1350, 1
        %vm1355 = vcmp.eq.s32.totalorder %v1351, 1
        %vm1356 = vcmp.eq.s32.totalorder %v1352, 1
        %vm1357 = vcmp.eq.s32.totalorder %v1353, 1
        %v1358 = vsel %vm1354, %v1332, 0.0
        %v1359 = vsel %vm1354, %v1333, 0.0
        %v1360 = vsel %vm1355, %v1334, 0.0
        %v1361 = vsel %vm1355, %v1335, 0.0
        %v1362 = vsel %vm1356, %v1336, 0.0
        %v1363 = vsel %vm1356, %v1337, 0.0
        %v1364 = vsel %vm1357, %v1338, 0.0
        %v1365 = vsel %vm1357, %v1339, 0.0
        %v1366 = vld [vmem:[#allocation2] sm:$0xff]
        %v1367 = vld [vmem:[#allocation2 + $0x8] sm:$0xff]
        %v1368 = vld [vmem:[#allocation2 + $0x10] sm:$0xff]
        %v1369 = vld [vmem:[#allocation2 + $0x18] sm:$0xff]
        %v1370 = vld [vmem:[#allocation2 + $0x20] sm:$0xff]
        %v1371 = vld [vmem:[#allocation2 + $0x28] sm:$0xff]
        %v1372 = vld [vmem:[#allocation2 + $0x30] sm:$0xff]
        %v1373 = vld [vmem:[#allocation2 + $0x38] sm:$0xff]
        %v1374 = vadd.f32 %v1366, %v1358
        %v1375 = vadd.f32 %v1367, %v1359
        %v1376 = vadd.f32 %v1368, %v1360
        %v1377 = vadd.f32 %v1369, %v1361
        %v1378 = vadd.f32 %v1370, %v1362
        %v1379 = vadd.f32 %v1371, %v1363
        %v1380 = vadd.f32 %v1372, %v1364
        %v1381 = vadd.f32 %v1373, %v1365
        %1382 = vst [vmem:[#allocation2] sm:$0xff] %v1374
        %1383 = vst.msk [vmem:[#allocation2 + $0x8] sm:$0xff] %vm581, %v1375
        %1384 = vst [vmem:[#allocation2 + $0x10] sm:$0xff] %v1376
        %1385 = vst.msk [vmem:[#allocation2 + $0x18] sm:$0xff] %vm581, %v1377
        %1386 = vst [vmem:[#allocation2 + $0x20] sm:$0xff] %v1378
        %1387 = vst.msk [vmem:[#allocation2 + $0x28] sm:$0xff] %vm581, %v1379
        %1388 = vst [vmem:[#allocation2 + $0x30] sm:$0xff] %v1380
        %1389 = vst.msk [vmem:[#allocation2 + $0x38] sm:$0xff] %vm581, %v1381
        %s1390 = smul.u32 8, 4
        %s1391 = smul.addr %s1390, 8
        %s1392 = scalar_lea.vmem %s248, %s1391
        %v1393 = vld [vmem:[%s1392] sm:$0xff]
        %v1394 = vld [vmem:[%s1392 + $0x8] sm:$0xff]
        %v1395 = vld [vmem:[%s1392 + $0x10] sm:$0xff]
        %v1396 = vld [vmem:[%s1392 + $0x18] sm:$0xff]
        %v1397 = vld [vmem:[%s1392 + $0x20] sm:$0xff]
        %v1398 = vld [vmem:[%s1392 + $0x28] sm:$0xff]
        %v1399 = vld [vmem:[%s1392 + $0x30] sm:$0xff]
        %v1400 = vld [vmem:[%s1392 + $0x38] sm:$0xff]
        %v1401 = vld [vmem:[%s1392 + $0x40] sm:$0xff]
        %v1402 = vld [vmem:[%s1392 + $0x48] sm:$0xff]
        %v1403 = vld [vmem:[%s1392 + $0x50] sm:$0xff]
        %v1404 = vld [vmem:[%s1392 + $0x58] sm:$0xff]
        %v1405 = vld [vmem:[%s1392 + $0x60] sm:$0xff]
        %v1406 = vld [vmem:[%s1392 + $0x68] sm:$0xff]
        %v1407 = vld [vmem:[%s1392 + $0x70] sm:$0xff]
        %v1408 = vld [vmem:[%s1392 + $0x78] sm:$0xff]
        %v1409 = vmax.f32 %v1393, -4.0
        %v1410 = vmax.f32 %v1394, -4.0
        %v1411 = vmax.f32 %v1397, -4.0
        %v1412 = vmax.f32 %v1398, -4.0
        %v1413 = vmax.f32 %v1401, -4.0
        %v1414 = vmax.f32 %v1402, -4.0
        %v1415 = vmax.f32 %v1405, -4.0
        %v1416 = vmax.f32 %v1406, -4.0
        %v1417 = vmin.f32 %v1409, 10.0
        %v1418 = vmin.f32 %v1410, 10.0
        %v1419 = vmin.f32 %v1411, 10.0
        %v1420 = vmin.f32 %v1412, 10.0
        %v1421 = vmin.f32 %v1413, 10.0
        %v1422 = vmin.f32 %v1414, 10.0
        %v1423 = vmin.f32 %v1415, 10.0
        %v1424 = vmin.f32 %v1416, 10.0
        %v1425 = vsub.f32 0.0, %v1417
        %v1426 = vsub.f32 0.0, %v1418
        %v1427 = vsub.f32 0.0, %v1419
        %v1428 = vsub.f32 0.0, %v1420
        %v1429 = vsub.f32 0.0, %v1421
        %v1430 = vsub.f32 0.0, %v1422
        %v1431 = vsub.f32 0.0, %v1423
        %v1432 = vsub.f32 0.0, %v1424
        %v1433 = vmul.f32 %v1425, 1.442695
        %v1434 = vpow.pop %v1433
        %v1435 = vmul.f32 %v1426, 1.442695
        %v1436 = vpow.pop %v1435
        %v1437 = vmul.f32 %v1427, 1.442695
        %v1438 = vpow.pop %v1437
        %v1439 = vmul.f32 %v1428, 1.442695
        %v1440 = vpow.pop %v1439
        %v1441 = vmul.f32 %v1429, 1.442695
        %v1442 = vpow.pop %v1441
        %v1443 = vmul.f32 %v1430, 1.442695
        %v1444 = vpow.pop %v1443
        %v1445 = vmul.f32 %v1431, 1.442695
        %v1446 = vpow.pop %v1445
        %v1447 = vmul.f32 %v1432, 1.442695
        %v1448 = vpow.pop %v1447
        %v1449 = vsub.f32 0.0, %v1434
        %v1450 = vsub.f32 0.0, %v1436
        %v1451 = vsub.f32 0.0, %v1438
        %v1452 = vsub.f32 0.0, %v1440
        %v1453 = vsub.f32 0.0, %v1442
        %v1454 = vsub.f32 0.0, %v1444
        %v1455 = vsub.f32 0.0, %v1446
        %v1456 = vsub.f32 0.0, %v1448
        %v1457 = vmul.f32 %v1449, 1.442695
        %v1458 = vpow.pop %v1457
        %v1459 = vmul.f32 %v1450, 1.442695
        %v1460 = vpow.pop %v1459
        %v1461 = vmul.f32 %v1451, 1.442695
        %v1462 = vpow.pop %v1461
        %v1463 = vmul.f32 %v1452, 1.442695
        %v1464 = vpow.pop %v1463
        %v1465 = vmul.f32 %v1453, 1.442695
        %v1466 = vpow.pop %v1465
        %v1467 = vmul.f32 %v1454, 1.442695
        %v1468 = vpow.pop %v1467
        %v1469 = vmul.f32 %v1455, 1.442695
        %v1470 = vpow.pop %v1469
        %v1471 = vmul.f32 %v1456, 1.442695
        %v1472 = vpow.pop %v1471
        %v1473 = vmax.f32 %v1394, -12.0
        %v1474 = vmax.f32 %v1395, -12.0
        %v1475 = vmax.f32 %v1396, -12.0
        %v1476 = vmax.f32 %v1398, -12.0
        %v1477 = vmax.f32 %v1399, -12.0
        %v1478 = vmax.f32 %v1400, -12.0
        %v1479 = vmax.f32 %v1402, -12.0
        %v1480 = vmax.f32 %v1403, -12.0
        %v1481 = vmax.f32 %v1404, -12.0
        %v1482 = vmax.f32 %v1406, -12.0
        %v1483 = vmax.f32 %v1407, -12.0
        %v1484 = vmax.f32 %v1408, -12.0
        %v1485 = vmin.f32 %v1473, 12.0
        %v1486 = vmin.f32 %v1474, 12.0
        %v1487 = vmin.f32 %v1475, 12.0
        %v1488 = vmin.f32 %v1476, 12.0
        %v1489 = vmin.f32 %v1477, 12.0
        %v1490 = vmin.f32 %v1478, 12.0
        %v1491 = vmin.f32 %v1479, 12.0
        %v1492 = vmin.f32 %v1480, 12.0
        %v1493 = vmin.f32 %v1481, 12.0
        %v1494 = vmin.f32 %v1482, 12.0
        %v1495 = vmin.f32 %v1483, 12.0
        %v1496 = vmin.f32 %v1484, 12.0
        %v1497 = vmul.f32 %v1485, 0.5
        %v1498 = vmul.f32 %v1486, 0.5
        %v1499 = vmul.f32 %v1487, 0.5
        %v1500 = vmul.f32 %v1488, 0.5
        %v1501 = vmul.f32 %v1489, 0.5
        %v1502 = vmul.f32 %v1490, 0.5
        %v1503 = vmul.f32 %v1491, 0.5
        %v1504 = vmul.f32 %v1492, 0.5
        %v1505 = vmul.f32 %v1493, 0.5
        %v1506 = vmul.f32 %v1494, 0.5
        %v1507 = vmul.f32 %v1495, 0.5
        %v1508 = vmul.f32 %v1496, 0.5
        %v1509 = vtanh.pop %v1497
        %v1510 = vtanh.pop %v1498
        %v1511 = vtanh.pop %v1499
        %v1512 = vtanh.pop %v1500
        %v1513 = vtanh.pop %v1501
        %v1514 = vtanh.pop %v1502
        %v1515 = vtanh.pop %v1503
        %v1516 = vtanh.pop %v1504
        %v1517 = vtanh.pop %v1505
        %v1518 = vtanh.pop %v1506
        %v1519 = vtanh.pop %v1507
        %v1520 = vtanh.pop %v1508
        %v1521 = vmul.f32 %v1509, 0.5
        %v1522 = vmul.f32 %v1510, 0.5
        %v1523 = vmul.f32 %v1511, 0.5
        %v1524 = vmul.f32 %v1512, 0.5
        %v1525 = vmul.f32 %v1513, 0.5
        %v1526 = vmul.f32 %v1514, 0.5
        %v1527 = vmul.f32 %v1515, 0.5
        %v1528 = vmul.f32 %v1516, 0.5
        %v1529 = vmul.f32 %v1517, 0.5
        %v1530 = vmul.f32 %v1518, 0.5
        %v1531 = vmul.f32 %v1519, 0.5
        %v1532 = vmul.f32 %v1520, 0.5
        %v1533 = vadd.f32 %v1521, 0.5
        %v1534 = vadd.f32 %v1522, 0.5
        %v1535 = vadd.f32 %v1523, 0.5
        %v1536 = vadd.f32 %v1524, 0.5
        %v1537 = vadd.f32 %v1525, 0.5
        %v1538 = vadd.f32 %v1526, 0.5
        %v1539 = vadd.f32 %v1527, 0.5
        %v1540 = vadd.f32 %v1528, 0.5
        %v1541 = vadd.f32 %v1529, 0.5
        %v1542 = vadd.f32 %v1530, 0.5
        %v1543 = vadd.f32 %v1531, 0.5
        %v1544 = vadd.f32 %v1532, 0.5
        %v1545 = vmul.f32 %v1396, 0.5
        %v1546 = vmul.f32 %v1400, 0.5
        %v1547 = vmul.f32 %v1404, 0.5
        %v1548 = vmul.f32 %v1408, 0.5
        %v1549 = vtanh.pop %v1545
        %v1550 = vtanh.pop %v1546
        %v1551 = vtanh.pop %v1547
        %v1552 = vtanh.pop %v1548
        %v1553 = vmul.f32 %v1549, 0.5
        %v1554 = vmul.f32 %v1550, 0.5
        %v1555 = vmul.f32 %v1551, 0.5
        %v1556 = vmul.f32 %v1552, 0.5
        %v1557 = vadd.f32 %v1553, 0.5
        %v1558 = vadd.f32 %v1554, 0.5
        %v1559 = vadd.f32 %v1555, 0.5
        %v1560 = vadd.f32 %v1556, 0.5
        %1573 = vrot.lane.b32.xlu0 %v1533, 56
        %v1574 = vpop.permute.xlu0 %1573
        %1575 = vrot.lane.b32.xlu0 %v1534, 56
        %v1576 = vpop.permute.xlu0 %1575
        %1577 = vrot.lane.b32.xlu0 %v1535, 56
        %v1578 = vpop.permute.xlu0 %1577
        %1579 = vrot.lane.b32.xlu0 %v1536, 56
        %v1580 = vpop.permute.xlu0 %1579
        %1581 = vrot.lane.b32.xlu0 %v1537, 56
        %v1582 = vpop.permute.xlu0 %1581
        %1583 = vrot.lane.b32.xlu0 %v1538, 56
        %v1584 = vpop.permute.xlu0 %1583
        %1585 = vrot.lane.b32.xlu0 %v1539, 56
        %v1586 = vpop.permute.xlu0 %1585
        %1587 = vrot.lane.b32.xlu0 %v1540, 56
        %v1588 = vpop.permute.xlu0 %1587
        %1589 = vrot.lane.b32.xlu0 %v1541, 56
        %v1590 = vpop.permute.xlu0 %1589
        %1591 = vrot.lane.b32.xlu0 %v1542, 56
        %v1592 = vpop.permute.xlu0 %1591
        %1593 = vrot.lane.b32.xlu0 %v1543, 56
        %v1594 = vpop.permute.xlu0 %1593
        %1595 = vrot.lane.b32.xlu0 %v1544, 56
        %v1596 = vpop.permute.xlu0 %1595
        %v1597 = vsel %vm504, %v1574, %v1576
        %v1598 = vsel %vm504, %v1576, %v1578
        %v1599 = vsel %vm504, %v1580, %v1582
        %v1600 = vsel %vm504, %v1582, %v1584
        %v1601 = vsel %vm504, %v1586, %v1588
        %v1602 = vsel %vm504, %v1588, %v1590
        %v1603 = vsel %vm504, %v1592, %v1594
        %v1604 = vsel %vm504, %v1594, %v1596
        %v1613 = vsub.f32 %v1458, %v1597
        %v1614 = vsub.f32 %v1460, %v1598
        %v1615 = vsub.f32 %v1462, %v1599
        %v1616 = vsub.f32 %v1464, %v1600
        %v1617 = vsub.f32 %v1466, %v1601
        %v1618 = vsub.f32 %v1468, %v1602
        %v1619 = vsub.f32 %v1470, %v1603
        %v1620 = vsub.f32 %v1472, %v1604
        %1622 = vset.pattern.permute.xlu0 16
        %1623 = vperm.xlu0 %1622, %v1557
        %v1624 = vpop.permute.xlu0 %1623
        %1627 = vset.pattern.permute.xlu0 16
        %1628 = vperm.xlu0 %1627, %v1558
        %v1629 = vpop.permute.xlu0 %1628
        %1632 = vset.pattern.permute.xlu0 16
        %1633 = vperm.xlu0 %1632, %v1559
        %v1634 = vpop.permute.xlu0 %1633
        %1637 = vset.pattern.permute.xlu0 16
        %1638 = vperm.xlu0 %1637, %v1560
        %v1639 = vpop.permute.xlu0 %1638
        %v1641 = vmul.f32 %v1624, %v1613
        %v1642 = vmul.f32 %v1624, %v1614
        %v1643 = vmul.f32 %v1629, %v1615
        %v1644 = vmul.f32 %v1629, %v1616
        %v1645 = vmul.f32 %v1634, %v1617
        %v1646 = vmul.f32 %v1634, %v1618
        %v1647 = vmul.f32 %v1639, %v1619
        %v1648 = vmul.f32 %v1639, %v1620
        %1657 = vrot.lane.b32.xlu0 %v1641, 72
        %v1658 = vpop.permute.xlu0 %1657
        %1659 = vrot.lane.b32.xlu0 %v1642, 72
        %v1660 = vpop.permute.xlu0 %1659
        %1661 = vrot.lane.b32.xlu0 %v1643, 72
        %v1662 = vpop.permute.xlu0 %1661
        %1663 = vrot.lane.b32.xlu0 %v1644, 72
        %v1664 = vpop.permute.xlu0 %1663
        %1665 = vrot.lane.b32.xlu0 %v1645, 72
        %v1666 = vpop.permute.xlu0 %1665
        %1667 = vrot.lane.b32.xlu0 %v1646, 72
        %v1668 = vpop.permute.xlu0 %1667
        %1669 = vrot.lane.b32.xlu0 %v1647, 72
        %v1670 = vpop.permute.xlu0 %1669
        %1671 = vrot.lane.b32.xlu0 %v1648, 72
        %v1672 = vpop.permute.xlu0 %1671
        %v1673 = vsel %vm581, %v1658, %v1660
        %v1674 = vsel %vm581, %v1662, %v1664
        %v1675 = vsel %vm581, %v1666, %v1668
        %v1676 = vsel %vm581, %v1670, %v1672
        %v1689 = vadd.f32 %v1533, %v1658
        %v1690 = vadd.f32 %v1534, %v1673
        %v1691 = vadd.f32 %v1535, %v1660
        %v1692 = vadd.f32 %v1536, %v1662
        %v1693 = vadd.f32 %v1537, %v1674
        %v1694 = vadd.f32 %v1538, %v1664
        %v1695 = vadd.f32 %v1539, %v1666
        %v1696 = vadd.f32 %v1540, %v1675
        %v1697 = vadd.f32 %v1541, %v1668
        %v1698 = vadd.f32 %v1542, %v1670
        %v1699 = vadd.f32 %v1543, %v1676
        %v1700 = vadd.f32 %v1544, %v1672
        %s1701 = scalar_lea.vmem %s271, 64
        %v1702 = vld [vmem:[%s1701] sm:$0xff]
        %v1703 = vld [vmem:[%s1701 + $0x8] sm:$0xff]
        %v1704 = vld [vmem:[%s1701 + $0x10] sm:$0xff]
        %v1705 = vld [vmem:[%s1701 + $0x18] sm:$0xff]
        %1706 = vset.pattern.permute.xlu0 0
        %1707 = vperm.xlu0 %1706, %v1702
        %v1708 = vpop.permute.xlu0 %1707
        %1709 = vset.pattern.permute.xlu0 0
        %1710 = vperm.xlu0 %1709, %v1703
        %v1711 = vpop.permute.xlu0 %1710
        %1712 = vset.pattern.permute.xlu0 0
        %1713 = vperm.xlu0 %1712, %v1704
        %v1714 = vpop.permute.xlu0 %1713
        %1715 = vset.pattern.permute.xlu0 0
        %1716 = vperm.xlu0 %1715, %v1705
        %v1717 = vpop.permute.xlu0 %1716
        %vm1718 = vcmp.eq.s32.totalorder %v615, %v1708
        %vm1719 = vcmp.eq.s32.totalorder %v616, %v1708
        %vm1720 = vcmp.eq.s32.totalorder %v615, %v1711
        %vm1721 = vcmp.eq.s32.totalorder %v616, %v1711
        %vm1722 = vcmp.eq.s32.totalorder %v615, %v1714
        %vm1723 = vcmp.eq.s32.totalorder %v616, %v1714
        %vm1724 = vcmp.eq.s32.totalorder %v615, %v1717
        %vm1725 = vcmp.eq.s32.totalorder %v616, %v1717
        %v1726 = vsub.f32 1.0, %v1689
        %v1727 = vsub.f32 1.0, %v1690
        %v1728 = vsub.f32 1.0, %v1691
        %v1729 = vsub.f32 1.0, %v1692
        %v1730 = vsub.f32 1.0, %v1693
        %v1731 = vsub.f32 1.0, %v1694
        %v1732 = vsub.f32 1.0, %v1695
        %v1733 = vsub.f32 1.0, %v1696
        %v1734 = vsub.f32 1.0, %v1697
        %v1735 = vsub.f32 1.0, %v1698
        %v1736 = vsub.f32 1.0, %v1699
        %v1737 = vsub.f32 1.0, %v1700
        %1750 = vrot.lane.b32.xlu0 %v1689, 56
        %v1751 = vpop.permute.xlu0 %1750
        %1752 = vrot.lane.b32.xlu0 %v1690, 56
        %v1753 = vpop.permute.xlu0 %1752
        %1754 = vrot.lane.b32.xlu0 %v1691, 56
        %v1755 = vpop.permute.xlu0 %1754
        %1756 = vrot.lane.b32.xlu0 %v1692, 56
        %v1757 = vpop.permute.xlu0 %1756
        %1758 = vrot.lane.b32.xlu0 %v1693, 56
        %v1759 = vpop.permute.xlu0 %1758
        %1760 = vrot.lane.b32.xlu0 %v1694, 56
        %v1761 = vpop.permute.xlu0 %1760
        %1762 = vrot.lane.b32.xlu0 %v1695, 56
        %v1763 = vpop.permute.xlu0 %1762
        %1764 = vrot.lane.b32.xlu0 %v1696, 56
        %v1765 = vpop.permute.xlu0 %1764
        %1766 = vrot.lane.b32.xlu0 %v1697, 56
        %v1767 = vpop.permute.xlu0 %1766
        %1768 = vrot.lane.b32.xlu0 %v1698, 56
        %v1769 = vpop.permute.xlu0 %1768
        %1770 = vrot.lane.b32.xlu0 %v1699, 56
        %v1771 = vpop.permute.xlu0 %1770
        %1772 = vrot.lane.b32.xlu0 %v1700, 56
        %v1773 = vpop.permute.xlu0 %1772
        %v1774 = vsel %vm504, %v1751, %v1753
        %v1775 = vsel %vm504, %v1753, %v1755
        %v1776 = vsel %vm504, %v1757, %v1759
        %v1777 = vsel %vm504, %v1759, %v1761
        %v1778 = vsel %vm504, %v1763, %v1765
        %v1779 = vsel %vm504, %v1765, %v1767
        %v1780 = vsel %vm504, %v1769, %v1771
        %v1781 = vsel %vm504, %v1771, %v1773
        %1802 = vrot.lane.b32.xlu0 %v1726, 56
        %v1803 = vpop.permute.xlu0 %1802
        %1804 = vrot.lane.b32.xlu0 %v1727, 56
        %v1805 = vpop.permute.xlu0 %1804
        %1806 = vrot.lane.b32.xlu0 %v1728, 56
        %v1807 = vpop.permute.xlu0 %1806
        %1808 = vrot.lane.b32.xlu0 %v1729, 56
        %v1809 = vpop.permute.xlu0 %1808
        %1810 = vrot.lane.b32.xlu0 %v1730, 56
        %v1811 = vpop.permute.xlu0 %1810
        %1812 = vrot.lane.b32.xlu0 %v1731, 56
        %v1813 = vpop.permute.xlu0 %1812
        %1814 = vrot.lane.b32.xlu0 %v1732, 56
        %v1815 = vpop.permute.xlu0 %1814
        %1816 = vrot.lane.b32.xlu0 %v1733, 56
        %v1817 = vpop.permute.xlu0 %1816
        %1818 = vrot.lane.b32.xlu0 %v1734, 56
        %v1819 = vpop.permute.xlu0 %1818
        %1820 = vrot.lane.b32.xlu0 %v1735, 56
        %v1821 = vpop.permute.xlu0 %1820
        %1822 = vrot.lane.b32.xlu0 %v1736, 56
        %v1823 = vpop.permute.xlu0 %1822
        %1824 = vrot.lane.b32.xlu0 %v1737, 56
        %v1825 = vpop.permute.xlu0 %1824
        %v1826 = vsel %vm504, %v1803, %v1805
        %v1827 = vsel %vm504, %v1805, %v1807
        %v1828 = vsel %vm504, %v1809, %v1811
        %v1829 = vsel %vm504, %v1811, %v1813
        %v1830 = vsel %vm504, %v1815, %v1817
        %v1831 = vsel %vm504, %v1817, %v1819
        %v1832 = vsel %vm504, %v1821, %v1823
        %v1833 = vsel %vm504, %v1823, %v1825
        %v1842 = vsel %vm1718, %v1774, %v1826
        %v1843 = vsel %vm1719, %v1775, %v1827
        %v1844 = vsel %vm1720, %v1776, %v1828
        %v1845 = vsel %vm1721, %v1777, %v1829
        %v1846 = vsel %vm1722, %v1778, %v1830
        %v1847 = vsel %vm1723, %v1779, %v1831
        %v1848 = vsel %vm1724, %v1780, %v1832
        %v1849 = vsel %vm1725, %v1781, %v1833
        %v1850 = vlog2.pop %v1842
        %v1851 = vmul.f32 %v1850, 0.6931472
        %v1852 = vlog2.pop %v1843
        %v1853 = vmul.f32 %v1852, 0.6931472
        %v1854 = vlog2.pop %v1844
        %v1855 = vmul.f32 %v1854, 0.6931472
        %v1856 = vlog2.pop %v1845
        %v1857 = vmul.f32 %v1856, 0.6931472
        %v1858 = vlog2.pop %v1846
        %v1859 = vmul.f32 %v1858, 0.6931472
        %v1860 = vlog2.pop %v1847
        %v1861 = vmul.f32 %v1860, 0.6931472
        %v1862 = vlog2.pop %v1848
        %v1863 = vmul.f32 %v1862, 0.6931472
        %v1864 = vlog2.pop %v1849
        %v1865 = vmul.f32 %v1864, 0.6931472
        %v1866 = vmax.f32 %v1851, -100.0
        %v1867 = vmax.f32 %v1853, -100.0
        %v1868 = vmax.f32 %v1855, -100.0
        %v1869 = vmax.f32 %v1857, -100.0
        %v1870 = vmax.f32 %v1859, -100.0
        %v1871 = vmax.f32 %v1861, -100.0
        %v1872 = vmax.f32 %v1863, -100.0
        %v1873 = vmax.f32 %v1865, -100.0
        %v1874 = vsub.f32 0.0, %v1866
        %v1875 = vsub.f32 0.0, %v1867
        %v1876 = vsub.f32 0.0, %v1868
        %v1877 = vsub.f32 0.0, %v1869
        %v1878 = vsub.f32 0.0, %v1870
        %v1879 = vsub.f32 0.0, %v1871
        %v1880 = vsub.f32 0.0, %v1872
        %v1881 = vsub.f32 0.0, %v1873
        %s1882 = sadd.s32 %s296, 64
        %v1883 = vstv %s1882
        %v1884 = vadd.s32 %v1883, %v795
        %v1885 = vadd.s32 %v1883, %v796
        %v1886 = vadd.s32 %v1883, %v797
        %v1887 = vadd.s32 %v1883, %v798
        %vm1888 = vcmp.lt.s32.totalorder %v1884, 500
        %vm1889 = vcmp.lt.s32.totalorder %v1885, 500
        %vm1890 = vcmp.lt.s32.totalorder %v1886, 500
        %vm1891 = vcmp.lt.s32.totalorder %v1887, 500
        %v1892 = vsel %vm1888, 1, 0
        %v1893 = vsel %vm1889, 1, 0
        %v1894 = vsel %vm1890, 1, 0
        %v1895 = vsel %vm1891, 1, 0
        %vm1896 = vcmp.eq.s32.totalorder %v1892, 1
        %vm1897 = vcmp.eq.s32.totalorder %v1893, 1
        %vm1898 = vcmp.eq.s32.totalorder %v1894, 1
        %vm1899 = vcmp.eq.s32.totalorder %v1895, 1
        %v1900 = vsel %vm1896, %v1874, 0.0
        %v1901 = vsel %vm1896, %v1875, 0.0
        %v1902 = vsel %vm1897, %v1876, 0.0
        %v1903 = vsel %vm1897, %v1877, 0.0
        %v1904 = vsel %vm1898, %v1878, 0.0
        %v1905 = vsel %vm1898, %v1879, 0.0
        %v1906 = vsel %vm1899, %v1880, 0.0
        %v1907 = vsel %vm1899, %v1881, 0.0
        %v1908 = vld [vmem:[#allocation2] sm:$0xff]
        %v1909 = vld [vmem:[#allocation2 + $0x8] sm:$0xff]
        %v1910 = vld [vmem:[#allocation2 + $0x10] sm:$0xff]
        %v1911 = vld [vmem:[#allocation2 + $0x18] sm:$0xff]
        %v1912 = vld [vmem:[#allocation2 + $0x20] sm:$0xff]
        %v1913 = vld [vmem:[#allocation2 + $0x28] sm:$0xff]
        %v1914 = vld [vmem:[#allocation2 + $0x30] sm:$0xff]
        %v1915 = vld [vmem:[#allocation2 + $0x38] sm:$0xff]
        %v1916 = vadd.f32 %v1908, %v1900
        %v1917 = vadd.f32 %v1909, %v1901
        %v1918 = vadd.f32 %v1910, %v1902
        %v1919 = vadd.f32 %v1911, %v1903
        %v1920 = vadd.f32 %v1912, %v1904
        %v1921 = vadd.f32 %v1913, %v1905
        %v1922 = vadd.f32 %v1914, %v1906
        %v1923 = vadd.f32 %v1915, %v1907
        %1924 = vst [vmem:[#allocation2] sm:$0xff] %v1916
        %1925 = vst.msk [vmem:[#allocation2 + $0x8] sm:$0xff] %vm581, %v1917
        %1926 = vst [vmem:[#allocation2 + $0x10] sm:$0xff] %v1918
        %1927 = vst.msk [vmem:[#allocation2 + $0x18] sm:$0xff] %vm581, %v1919
        %1928 = vst [vmem:[#allocation2 + $0x20] sm:$0xff] %v1920
        %1929 = vst.msk [vmem:[#allocation2 + $0x28] sm:$0xff] %vm581, %v1921
        %1930 = vst [vmem:[#allocation2 + $0x30] sm:$0xff] %v1922
        %1931 = vst.msk [vmem:[#allocation2 + $0x38] sm:$0xff] %vm581, %v1923
        %s1932 = smul.u32 12, 4
        %s1933 = smul.addr %s1932, 8
        %s1934 = scalar_lea.vmem %s248, %s1933
        %v1935 = vld [vmem:[%s1934] sm:$0xff]
        %v1936 = vld [vmem:[%s1934 + $0x8] sm:$0xff]
        %v1937 = vld [vmem:[%s1934 + $0x10] sm:$0xff]
        %v1938 = vld [vmem:[%s1934 + $0x18] sm:$0xff]
        %v1939 = vld [vmem:[%s1934 + $0x20] sm:$0xff]
        %v1940 = vld [vmem:[%s1934 + $0x28] sm:$0xff]
        %v1941 = vld [vmem:[%s1934 + $0x30] sm:$0xff]
        %v1942 = vld [vmem:[%s1934 + $0x38] sm:$0xff]
        %v1943 = vld [vmem:[%s1934 + $0x40] sm:$0xff]
        %v1944 = vld [vmem:[%s1934 + $0x48] sm:$0xff]
        %v1945 = vld [vmem:[%s1934 + $0x50] sm:$0xff]
        %v1946 = vld [vmem:[%s1934 + $0x58] sm:$0xff]
        %v1947 = vld [vmem:[%s1934 + $0x60] sm:$0xff]
        %v1948 = vld [vmem:[%s1934 + $0x68] sm:$0xff]
        %v1949 = vld [vmem:[%s1934 + $0x70] sm:$0xff]
        %v1950 = vld [vmem:[%s1934 + $0x78] sm:$0xff]
        %v1951 = vmax.f32 %v1935, -4.0
        %v1952 = vmax.f32 %v1936, -4.0
        %v1953 = vmax.f32 %v1939, -4.0
        %v1954 = vmax.f32 %v1940, -4.0
        %v1955 = vmax.f32 %v1943, -4.0
        %v1956 = vmax.f32 %v1944, -4.0
        %v1957 = vmax.f32 %v1947, -4.0
        %v1958 = vmax.f32 %v1948, -4.0
        %v1959 = vmin.f32 %v1951, 10.0
        %v1960 = vmin.f32 %v1952, 10.0
        %v1961 = vmin.f32 %v1953, 10.0
        %v1962 = vmin.f32 %v1954, 10.0
        %v1963 = vmin.f32 %v1955, 10.0
        %v1964 = vmin.f32 %v1956, 10.0
        %v1965 = vmin.f32 %v1957, 10.0
        %v1966 = vmin.f32 %v1958, 10.0
        %v1967 = vsub.f32 0.0, %v1959
        %v1968 = vsub.f32 0.0, %v1960
        %v1969 = vsub.f32 0.0, %v1961
        %v1970 = vsub.f32 0.0, %v1962
        %v1971 = vsub.f32 0.0, %v1963
        %v1972 = vsub.f32 0.0, %v1964
        %v1973 = vsub.f32 0.0, %v1965
        %v1974 = vsub.f32 0.0, %v1966
        %v1975 = vmul.f32 %v1967, 1.442695
        %v1976 = vpow.pop %v1975
        %v1977 = vmul.f32 %v1968, 1.442695
        %v1978 = vpow.pop %v1977
        %v1979 = vmul.f32 %v1969, 1.442695
        %v1980 = vpow.pop %v1979
        %v1981 = vmul.f32 %v1970, 1.442695
        %v1982 = vpow.pop %v1981
        %v1983 = vmul.f32 %v1971, 1.442695
        %v1984 = vpow.pop %v1983
        %v1985 = vmul.f32 %v1972, 1.442695
        %v1986 = vpow.pop %v1985
        %v1987 = vmul.f32 %v1973, 1.442695
        %v1988 = vpow.pop %v1987
        %v1989 = vmul.f32 %v1974, 1.442695
        %v1990 = vpow.pop %v1989
        %v1991 = vsub.f32 0.0, %v1976
        %v1992 = vsub.f32 0.0, %v1978
        %v1993 = vsub.f32 0.0, %v1980
        %v1994 = vsub.f32 0.0, %v1982
        %v1995 = vsub.f32 0.0, %v1984
        %v1996 = vsub.f32 0.0, %v1986
        %v1997 = vsub.f32 0.0, %v1988
        %v1998 = vsub.f32 0.0, %v1990
        %v1999 = vmul.f32 %v1991, 1.442695
        %v2000 = vpow.pop %v1999
        %v2001 = vmul.f32 %v1992, 1.442695
        %v2002 = vpow.pop %v2001
        %v2003 = vmul.f32 %v1993, 1.442695
        %v2004 = vpow.pop %v2003
        %v2005 = vmul.f32 %v1994, 1.442695
        %v2006 = vpow.pop %v2005
        %v2007 = vmul.f32 %v1995, 1.442695
        %v2008 = vpow.pop %v2007
        %v2009 = vmul.f32 %v1996, 1.442695
        %v2010 = vpow.pop %v2009
        %v2011 = vmul.f32 %v1997, 1.442695
        %v2012 = vpow.pop %v2011
        %v2013 = vmul.f32 %v1998, 1.442695
        %v2014 = vpow.pop %v2013
        %v2015 = vmax.f32 %v1936, -12.0
        %v2016 = vmax.f32 %v1937, -12.0
        %v2017 = vmax.f32 %v1938, -12.0
        %v2018 = vmax.f32 %v1940, -12.0
        %v2019 = vmax.f32 %v1941, -12.0
        %v2020 = vmax.f32 %v1942, -12.0
        %v2021 = vmax.f32 %v1944, -12.0
        %v2022 = vmax.f32 %v1945, -12.0
        %v2023 = vmax.f32 %v1946, -12.0
        %v2024 = vmax.f32 %v1948, -12.0
        %v2025 = vmax.f32 %v1949, -12.0
        %v2026 = vmax.f32 %v1950, -12.0
        %v2027 = vmin.f32 %v2015, 12.0
        %v2028 = vmin.f32 %v2016, 12.0
        %v2029 = vmin.f32 %v2017, 12.0
        %v2030 = vmin.f32 %v2018, 12.0
        %v2031 = vmin.f32 %v2019, 12.0
        %v2032 = vmin.f32 %v2020, 12.0
        %v2033 = vmin.f32 %v2021, 12.0
        %v2034 = vmin.f32 %v2022, 12.0
        %v2035 = vmin.f32 %v2023, 12.0
        %v2036 = vmin.f32 %v2024, 12.0
        %v2037 = vmin.f32 %v2025, 12.0
        %v2038 = vmin.f32 %v2026, 12.0
        %v2039 = vmul.f32 %v2027, 0.5
        %v2040 = vmul.f32 %v2028, 0.5
        %v2041 = vmul.f32 %v2029, 0.5
        %v2042 = vmul.f32 %v2030, 0.5
        %v2043 = vmul.f32 %v2031, 0.5
        %v2044 = vmul.f32 %v2032, 0.5
        %v2045 = vmul.f32 %v2033, 0.5
        %v2046 = vmul.f32 %v2034, 0.5
        %v2047 = vmul.f32 %v2035, 0.5
        %v2048 = vmul.f32 %v2036, 0.5
        %v2049 = vmul.f32 %v2037, 0.5
        %v2050 = vmul.f32 %v2038, 0.5
        %v2051 = vtanh.pop %v2039
        %v2052 = vtanh.pop %v2040
        %v2053 = vtanh.pop %v2041
        %v2054 = vtanh.pop %v2042
        %v2055 = vtanh.pop %v2043
        %v2056 = vtanh.pop %v2044
        %v2057 = vtanh.pop %v2045
        %v2058 = vtanh.pop %v2046
        %v2059 = vtanh.pop %v2047
        %v2060 = vtanh.pop %v2048
        %v2061 = vtanh.pop %v2049
        %v2062 = vtanh.pop %v2050
        %v2063 = vmul.f32 %v2051, 0.5
        %v2064 = vmul.f32 %v2052, 0.5
        %v2065 = vmul.f32 %v2053, 0.5
        %v2066 = vmul.f32 %v2054, 0.5
        %v2067 = vmul.f32 %v2055, 0.5
        %v2068 = vmul.f32 %v2056, 0.5
        %v2069 = vmul.f32 %v2057, 0.5
        %v2070 = vmul.f32 %v2058, 0.5
        %v2071 = vmul.f32 %v2059, 0.5
        %v2072 = vmul.f32 %v2060, 0.5
        %v2073 = vmul.f32 %v2061, 0.5
        %v2074 = vmul.f32 %v2062, 0.5
        %v2075 = vadd.f32 %v2063, 0.5
        %v2076 = vadd.f32 %v2064, 0.5
        %v2077 = vadd.f32 %v2065, 0.5
        %v2078 = vadd.f32 %v2066, 0.5
        %v2079 = vadd.f32 %v2067, 0.5
        %v2080 = vadd.f32 %v2068, 0.5
        %v2081 = vadd.f32 %v2069, 0.5
        %v2082 = vadd.f32 %v2070, 0.5
        %v2083 = vadd.f32 %v2071, 0.5
        %v2084 = vadd.f32 %v2072, 0.5
        %v2085 = vadd.f32 %v2073, 0.5
        %v2086 = vadd.f32 %v2074, 0.5
        %v2087 = vmul.f32 %v1938, 0.5
        %v2088 = vmul.f32 %v1942, 0.5
        %v2089 = vmul.f32 %v1946, 0.5
        %v2090 = vmul.f32 %v1950, 0.5
        %v2091 = vtanh.pop %v2087
        %v2092 = vtanh.pop %v2088
        %v2093 = vtanh.pop %v2089
        %v2094 = vtanh.pop %v2090
        %v2095 = vmul.f32 %v2091, 0.5
        %v2096 = vmul.f32 %v2092, 0.5
        %v2097 = vmul.f32 %v2093, 0.5
        %v2098 = vmul.f32 %v2094, 0.5
        %v2099 = vadd.f32 %v2095, 0.5
        %v2100 = vadd.f32 %v2096, 0.5
        %v2101 = vadd.f32 %v2097, 0.5
        %v2102 = vadd.f32 %v2098, 0.5
        %2115 = vrot.lane.b32.xlu0 %v2075, 56
        %v2116 = vpop.permute.xlu0 %2115
        %2117 = vrot.lane.b32.xlu0 %v2076, 56
        %v2118 = vpop.permute.xlu0 %2117
        %2119 = vrot.lane.b32.xlu0 %v2077, 56
        %v2120 = vpop.permute.xlu0 %2119
        %2121 = vrot.lane.b32.xlu0 %v2078, 56
        %v2122 = vpop.permute.xlu0 %2121
        %2123 = vrot.lane.b32.xlu0 %v2079, 56
        %v2124 = vpop.permute.xlu0 %2123
        %2125 = vrot.lane.b32.xlu0 %v2080, 56
        %v2126 = vpop.permute.xlu0 %2125
        %2127 = vrot.lane.b32.xlu0 %v2081, 56
        %v2128 = vpop.permute.xlu0 %2127
        %2129 = vrot.lane.b32.xlu0 %v2082, 56
        %v2130 = vpop.permute.xlu0 %2129
        %2131 = vrot.lane.b32.xlu0 %v2083, 56
        %v2132 = vpop.permute.xlu0 %2131
        %2133 = vrot.lane.b32.xlu0 %v2084, 56
        %v2134 = vpop.permute.xlu0 %2133
        %2135 = vrot.lane.b32.xlu0 %v2085, 56
        %v2136 = vpop.permute.xlu0 %2135
        %2137 = vrot.lane.b32.xlu0 %v2086, 56
        %v2138 = vpop.permute.xlu0 %2137
        %v2139 = vsel %vm504, %v2116, %v2118
        %v2140 = vsel %vm504, %v2118, %v2120
        %v2141 = vsel %vm504, %v2122, %v2124
        %v2142 = vsel %vm504, %v2124, %v2126
        %v2143 = vsel %vm504, %v2128, %v2130
        %v2144 = vsel %vm504, %v2130, %v2132
        %v2145 = vsel %vm504, %v2134, %v2136
        %v2146 = vsel %vm504, %v2136, %v2138
        %v2155 = vsub.f32 %v2000, %v2139
        %v2156 = vsub.f32 %v2002, %v2140
        %v2157 = vsub.f32 %v2004, %v2141
        %v2158 = vsub.f32 %v2006, %v2142
        %v2159 = vsub.f32 %v2008, %v2143
        %v2160 = vsub.f32 %v2010, %v2144
        %v2161 = vsub.f32 %v2012, %v2145
        %v2162 = vsub.f32 %v2014, %v2146
        %2164 = vset.pattern.permute.xlu0 16
        %2165 = vperm.xlu0 %2164, %v2099
        %v2166 = vpop.permute.xlu0 %2165
        %2169 = vset.pattern.permute.xlu0 16
        %2170 = vperm.xlu0 %2169, %v2100
        %v2171 = vpop.permute.xlu0 %2170
        %2174 = vset.pattern.permute.xlu0 16
        %2175 = vperm.xlu0 %2174, %v2101
        %v2176 = vpop.permute.xlu0 %2175
        %2179 = vset.pattern.permute.xlu0 16
        %2180 = vperm.xlu0 %2179, %v2102
        %v2181 = vpop.permute.xlu0 %2180
        %v2183 = vmul.f32 %v2166, %v2155
        %v2184 = vmul.f32 %v2166, %v2156
        %v2185 = vmul.f32 %v2171, %v2157
        %v2186 = vmul.f32 %v2171, %v2158
        %v2187 = vmul.f32 %v2176, %v2159
        %v2188 = vmul.f32 %v2176, %v2160
        %v2189 = vmul.f32 %v2181, %v2161
        %v2190 = vmul.f32 %v2181, %v2162
        %2199 = vrot.lane.b32.xlu0 %v2183, 72
        %v2200 = vpop.permute.xlu0 %2199
        %2201 = vrot.lane.b32.xlu0 %v2184, 72
        %v2202 = vpop.permute.xlu0 %2201
        %2203 = vrot.lane.b32.xlu0 %v2185, 72
        %v2204 = vpop.permute.xlu0 %2203
        %2205 = vrot.lane.b32.xlu0 %v2186, 72
        %v2206 = vpop.permute.xlu0 %2205
        %2207 = vrot.lane.b32.xlu0 %v2187, 72
        %v2208 = vpop.permute.xlu0 %2207
        %2209 = vrot.lane.b32.xlu0 %v2188, 72
        %v2210 = vpop.permute.xlu0 %2209
        %2211 = vrot.lane.b32.xlu0 %v2189, 72
        %v2212 = vpop.permute.xlu0 %2211
        %2213 = vrot.lane.b32.xlu0 %v2190, 72
        %v2214 = vpop.permute.xlu0 %2213
        %v2215 = vsel %vm581, %v2200, %v2202
        %v2216 = vsel %vm581, %v2204, %v2206
        %v2217 = vsel %vm581, %v2208, %v2210
        %v2218 = vsel %vm581, %v2212, %v2214
        %v2231 = vadd.f32 %v2075, %v2200
        %v2232 = vadd.f32 %v2076, %v2215
        %v2233 = vadd.f32 %v2077, %v2202
        %v2234 = vadd.f32 %v2078, %v2204
        %v2235 = vadd.f32 %v2079, %v2216
        %v2236 = vadd.f32 %v2080, %v2206
        %v2237 = vadd.f32 %v2081, %v2208
        %v2238 = vadd.f32 %v2082, %v2217
        %v2239 = vadd.f32 %v2083, %v2210
        %v2240 = vadd.f32 %v2084, %v2212
        %v2241 = vadd.f32 %v2085, %v2218
        %v2242 = vadd.f32 %v2086, %v2214
        %s2243 = scalar_lea.vmem %s271, 96
        %v2244 = vld [vmem:[%s2243] sm:$0xff]
        %v2245 = vld [vmem:[%s2243 + $0x8] sm:$0xff]
        %v2246 = vld [vmem:[%s2243 + $0x10] sm:$0xff]
        %v2247 = vld [vmem:[%s2243 + $0x18] sm:$0xff]
        %2248 = vset.pattern.permute.xlu0 0
        %2249 = vperm.xlu0 %2248, %v2244
        %v2250 = vpop.permute.xlu0 %2249
        %2251 = vset.pattern.permute.xlu0 0
        %2252 = vperm.xlu0 %2251, %v2245
        %v2253 = vpop.permute.xlu0 %2252
        %2254 = vset.pattern.permute.xlu0 0
        %2255 = vperm.xlu0 %2254, %v2246
        %v2256 = vpop.permute.xlu0 %2255
        %2257 = vset.pattern.permute.xlu0 0
        %2258 = vperm.xlu0 %2257, %v2247
        %v2259 = vpop.permute.xlu0 %2258
        %vm2260 = vcmp.eq.s32.totalorder %v615, %v2250
        %vm2261 = vcmp.eq.s32.totalorder %v616, %v2250
        %vm2262 = vcmp.eq.s32.totalorder %v615, %v2253
        %vm2263 = vcmp.eq.s32.totalorder %v616, %v2253
        %vm2264 = vcmp.eq.s32.totalorder %v615, %v2256
        %vm2265 = vcmp.eq.s32.totalorder %v616, %v2256
        %vm2266 = vcmp.eq.s32.totalorder %v615, %v2259
        %vm2267 = vcmp.eq.s32.totalorder %v616, %v2259
        %v2268 = vsub.f32 1.0, %v2231
        %v2269 = vsub.f32 1.0, %v2232
        %v2270 = vsub.f32 1.0, %v2233
        %v2271 = vsub.f32 1.0, %v2234
        %v2272 = vsub.f32 1.0, %v2235
        %v2273 = vsub.f32 1.0, %v2236
        %v2274 = vsub.f32 1.0, %v2237
        %v2275 = vsub.f32 1.0, %v2238
        %v2276 = vsub.f32 1.0, %v2239
        %v2277 = vsub.f32 1.0, %v2240
        %v2278 = vsub.f32 1.0, %v2241
        %v2279 = vsub.f32 1.0, %v2242
        %2292 = vrot.lane.b32.xlu0 %v2231, 56
        %v2293 = vpop.permute.xlu0 %2292
        %2294 = vrot.lane.b32.xlu0 %v2232, 56
        %v2295 = vpop.permute.xlu0 %2294
        %2296 = vrot.lane.b32.xlu0 %v2233, 56
        %v2297 = vpop.permute.xlu0 %2296
        %2298 = vrot.lane.b32.xlu0 %v2234, 56
        %v2299 = vpop.permute.xlu0 %2298
        %2300 = vrot.lane.b32.xlu0 %v2235, 56
        %v2301 = vpop.permute.xlu0 %2300
        %2302 = vrot.lane.b32.xlu0 %v2236, 56
        %v2303 = vpop.permute.xlu0 %2302
        %2304 = vrot.lane.b32.xlu0 %v2237, 56
        %v2305 = vpop.permute.xlu0 %2304
        %2306 = vrot.lane.b32.xlu0 %v2238, 56
        %v2307 = vpop.permute.xlu0 %2306
        %2308 = vrot.lane.b32.xlu0 %v2239, 56
        %v2309 = vpop.permute.xlu0 %2308
        %2310 = vrot.lane.b32.xlu0 %v2240, 56
        %v2311 = vpop.permute.xlu0 %2310
        %2312 = vrot.lane.b32.xlu0 %v2241, 56
        %v2313 = vpop.permute.xlu0 %2312
        %2314 = vrot.lane.b32.xlu0 %v2242, 56
        %v2315 = vpop.permute.xlu0 %2314
        %v2316 = vsel %vm504, %v2293, %v2295
        %v2317 = vsel %vm504, %v2295, %v2297
        %v2318 = vsel %vm504, %v2299, %v2301
        %v2319 = vsel %vm504, %v2301, %v2303
        %v2320 = vsel %vm504, %v2305, %v2307
        %v2321 = vsel %vm504, %v2307, %v2309
        %v2322 = vsel %vm504, %v2311, %v2313
        %v2323 = vsel %vm504, %v2313, %v2315
        %2344 = vrot.lane.b32.xlu0 %v2268, 56
        %v2345 = vpop.permute.xlu0 %2344
        %2346 = vrot.lane.b32.xlu0 %v2269, 56
        %v2347 = vpop.permute.xlu0 %2346
        %2348 = vrot.lane.b32.xlu0 %v2270, 56
        %v2349 = vpop.permute.xlu0 %2348
        %2350 = vrot.lane.b32.xlu0 %v2271, 56
        %v2351 = vpop.permute.xlu0 %2350
        %2352 = vrot.lane.b32.xlu0 %v2272, 56
        %v2353 = vpop.permute.xlu0 %2352
        %2354 = vrot.lane.b32.xlu0 %v2273, 56
        %v2355 = vpop.permute.xlu0 %2354
        %2356 = vrot.lane.b32.xlu0 %v2274, 56
        %v2357 = vpop.permute.xlu0 %2356
        %2358 = vrot.lane.b32.xlu0 %v2275, 56
        %v2359 = vpop.permute.xlu0 %2358
        %2360 = vrot.lane.b32.xlu0 %v2276, 56
        %v2361 = vpop.permute.xlu0 %2360
        %2362 = vrot.lane.b32.xlu0 %v2277, 56
        %v2363 = vpop.permute.xlu0 %2362
        %2364 = vrot.lane.b32.xlu0 %v2278, 56
        %v2365 = vpop.permute.xlu0 %2364
        %2366 = vrot.lane.b32.xlu0 %v2279, 56
        %v2367 = vpop.permute.xlu0 %2366
        %v2368 = vsel %vm504, %v2345, %v2347
        %v2369 = vsel %vm504, %v2347, %v2349
        %v2370 = vsel %vm504, %v2351, %v2353
        %v2371 = vsel %vm504, %v2353, %v2355
        %v2372 = vsel %vm504, %v2357, %v2359
        %v2373 = vsel %vm504, %v2359, %v2361
        %v2374 = vsel %vm504, %v2363, %v2365
        %v2375 = vsel %vm504, %v2365, %v2367
        %v2384 = vsel %vm2260, %v2316, %v2368
        %v2385 = vsel %vm2261, %v2317, %v2369
        %v2386 = vsel %vm2262, %v2318, %v2370
        %v2387 = vsel %vm2263, %v2319, %v2371
        %v2388 = vsel %vm2264, %v2320, %v2372
        %v2389 = vsel %vm2265, %v2321, %v2373
        %v2390 = vsel %vm2266, %v2322, %v2374
        %v2391 = vsel %vm2267, %v2323, %v2375
        %v2392 = vlog2.pop %v2384
        %v2393 = vmul.f32 %v2392, 0.6931472
        %v2394 = vlog2.pop %v2385
        %v2395 = vmul.f32 %v2394, 0.6931472
        %v2396 = vlog2.pop %v2386
        %v2397 = vmul.f32 %v2396, 0.6931472
        %v2398 = vlog2.pop %v2387
        %v2399 = vmul.f32 %v2398, 0.6931472
        %v2400 = vlog2.pop %v2388
        %v2401 = vmul.f32 %v2400, 0.6931472
        %v2402 = vlog2.pop %v2389
        %v2403 = vmul.f32 %v2402, 0.6931472
        %v2404 = vlog2.pop %v2390
        %v2405 = vmul.f32 %v2404, 0.6931472
        %v2406 = vlog2.pop %v2391
        %v2407 = vmul.f32 %v2406, 0.6931472
        %v2408 = vmax.f32 %v2393, -100.0
        %v2409 = vmax.f32 %v2395, -100.0
        %v2410 = vmax.f32 %v2397, -100.0
        %v2411 = vmax.f32 %v2399, -100.0
        %v2412 = vmax.f32 %v2401, -100.0
        %v2413 = vmax.f32 %v2403, -100.0
        %v2414 = vmax.f32 %v2405, -100.0
        %v2415 = vmax.f32 %v2407, -100.0
        %v2416 = vsub.f32 0.0, %v2408
        %v2417 = vsub.f32 0.0, %v2409
        %v2418 = vsub.f32 0.0, %v2410
        %v2419 = vsub.f32 0.0, %v2411
        %v2420 = vsub.f32 0.0, %v2412
        %v2421 = vsub.f32 0.0, %v2413
        %v2422 = vsub.f32 0.0, %v2414
        %v2423 = vsub.f32 0.0, %v2415
        %s2424 = sadd.s32 %s296, 96
        %v2425 = vstv %s2424
        %v2426 = vadd.s32 %v2425, %v795
        %v2427 = vadd.s32 %v2425, %v796
        %v2428 = vadd.s32 %v2425, %v797
        %v2429 = vadd.s32 %v2425, %v798
        %vm2430 = vcmp.lt.s32.totalorder %v2426, 500
        %vm2431 = vcmp.lt.s32.totalorder %v2427, 500
        %vm2432 = vcmp.lt.s32.totalorder %v2428, 500
        %vm2433 = vcmp.lt.s32.totalorder %v2429, 500
        %v2434 = vsel %vm2430, 1, 0
        %v2435 = vsel %vm2431, 1, 0
        %v2436 = vsel %vm2432, 1, 0
        %v2437 = vsel %vm2433, 1, 0
        %vm2438 = vcmp.eq.s32.totalorder %v2434, 1
        %vm2439 = vcmp.eq.s32.totalorder %v2435, 1
        %vm2440 = vcmp.eq.s32.totalorder %v2436, 1
        %vm2441 = vcmp.eq.s32.totalorder %v2437, 1
        %v2442 = vsel %vm2438, %v2416, 0.0
        %v2443 = vsel %vm2438, %v2417, 0.0
        %v2444 = vsel %vm2439, %v2418, 0.0
        %v2445 = vsel %vm2439, %v2419, 0.0
        %v2446 = vsel %vm2440, %v2420, 0.0
        %v2447 = vsel %vm2440, %v2421, 0.0
        %v2448 = vsel %vm2441, %v2422, 0.0
        %v2449 = vsel %vm2441, %v2423, 0.0
        %v2450 = vld [vmem:[#allocation2] sm:$0xff]
        %v2451 = vld [vmem:[#allocation2 + $0x8] sm:$0xff]
        %v2452 = vld [vmem:[#allocation2 + $0x10] sm:$0xff]
        %v2453 = vld [vmem:[#allocation2 + $0x18] sm:$0xff]
        %v2454 = vld [vmem:[#allocation2 + $0x20] sm:$0xff]
        %v2455 = vld [vmem:[#allocation2 + $0x28] sm:$0xff]
        %v2456 = vld [vmem:[#allocation2 + $0x30] sm:$0xff]
        %v2457 = vld [vmem:[#allocation2 + $0x38] sm:$0xff]
        %v2458 = vadd.f32 %v2450, %v2442
        %v2459 = vadd.f32 %v2451, %v2443
        %v2460 = vadd.f32 %v2452, %v2444
        %v2461 = vadd.f32 %v2453, %v2445
        %v2462 = vadd.f32 %v2454, %v2446
        %v2463 = vadd.f32 %v2455, %v2447
        %v2464 = vadd.f32 %v2456, %v2448
        %v2465 = vadd.f32 %v2457, %v2449
        %2466 = vst [vmem:[#allocation2] sm:$0xff] %v2458
        %2467 = vst.msk [vmem:[#allocation2 + $0x8] sm:$0xff] %vm581, %v2459
        %2468 = vst [vmem:[#allocation2 + $0x10] sm:$0xff] %v2460
        %2469 = vst.msk [vmem:[#allocation2 + $0x18] sm:$0xff] %vm581, %v2461
        %2470 = vst [vmem:[#allocation2 + $0x20] sm:$0xff] %v2462
        %2471 = vst.msk [vmem:[#allocation2 + $0x28] sm:$0xff] %vm581, %v2463
        %2472 = vst [vmem:[#allocation2 + $0x30] sm:$0xff] %v2464
        %2473 = vst.msk [vmem:[#allocation2 + $0x38] sm:$0xff] %vm581, %v2465
        %p2474 = scmp.eq.s32.totalorder %s21, 1
        // Predicated region
        $region33: #{tpu_custom_call.1} parent=27 // pred_check
          %p2475 = pneg %p2474
        $region34: #{tpu_custom_call.1} parent=27 // pred_check_branch
          %2477 = sbr.rel (%p2475) target = $region36
        $region35: #{tpu_custom_call.1} parent=27 // pred_region
          %v2478 = vld [vmem:[#allocation2] sm:$0xff]
          %v2479 = vld [vmem:[#allocation2 + $0x8] sm:$0xff]
          %v2480 = vld [vmem:[#allocation2 + $0x10] sm:$0xff]
          %v2481 = vld [vmem:[#allocation2 + $0x18] sm:$0xff]
          %v2482 = vld [vmem:[#allocation2 + $0x20] sm:$0xff]
          %v2483 = vld [vmem:[#allocation2 + $0x28] sm:$0xff]
          %v2484 = vld [vmem:[#allocation2 + $0x30] sm:$0xff]
          %v2485 = vld [vmem:[#allocation2 + $0x38] sm:$0xff]
          %v2486 = vsel %vm581, %v2479, 0.0
          %v2487 = vadd.f32 %v2478, %v2486
          %v2488 = vadd.f32 %v2487, %v2480
          %v2489 = vsel %vm581, %v2481, 0.0
          %v2490 = vadd.f32 %v2488, %v2489
          %v2491 = vadd.f32 %v2490, %v2482
          %v2492 = vsel %vm581, %v2483, 0.0
          %v2493 = vadd.f32 %v2491, %v2492
          %v2494 = vadd.f32 %v2493, %v2484
          %v2495 = vsel %vm581, %v2485, 0.0
          %v2496 = vadd.f32 %v2494, %v2495
          %2497 = vadd.xlane.f32.xlu0 %v2496
          %v2498 = vpop.xlane.xlu0 %2497
          %v2499 = vrot.slane %v2498, 4
          %v2500 = vadd.f32 %v2498, %v2499
          %v2501 = vrot.slane %v2500, 2
          %v2502 = vadd.f32 %v2500, %v2501
          %v2503 = vrot.slane %v2502, 1
          %v2504 = vadd.f32 %v2502, %v2503
          %s2505 = vtos %v2504
          %v2506 = vstv %s2505
          %2507 = vst [vmem:[%s233] sm:$0x1] %v2506
        $region36: #{tpu_custom_call.1} parent=27 // pred_fallthru
          _
        %s2508 = sand.u32 %s104, 1
        %s2509 = scalar_lea.sflag [#allocation4], %s2508
        %s2510 = sand.u32 %s104, 1
        %s2511 = scalar_lea.vmem [#allocation3], %s2510
        // Predicated region
        $region37: #{tpu_custom_call.1} parent=27 // pred_check
          %p2512 = pneg %p114
        $region38: #{tpu_custom_call.1} parent=27 // pred_check_branch
          %2514 = sbr.rel (%p2512) target = $region40
        $region39: #{tpu_custom_call.1} parent=27 // pred_region
          %s2516 = ssub.s32 16, 16
          %2517 = vsyncadd %s2509, %s2516
          %s2518 = smul.addr %s20, 16
          %s2519 = scalar_lea.hbm %s2, %s2518
          %s2521 = sshll.u32 %s2511, 4
          %s2522 = int_to_ptr.vmem [resolvable:$true] %s2521
          %2524 = dma.vmem_to_hbm [thread:$0]  %s2522, 16, %s2519, %s2509
        $region40: #{tpu_custom_call.1} parent=27 // pred_fallthru
          _
      $region28: #{tpu_custom_call.1} parent=5 // pred_fallthru
        _
      %p2525 = scmp.le.s32.totalorder 2, %s11
      // Predicated region
      $region41: #{tpu_custom_call.1} parent=5 // pred_check
        %p2526 = pneg %p2525
      $region42: #{tpu_custom_call.1} parent=5 // pred_check_branch
        %2528 = sbr.rel (%p2526) target = $region44
      $region43: #{tpu_custom_call.1} parent=5 // pred_region
        %s2529 = ssub.s32 %s11, 2
        // Predicated region
        $region45: #{tpu_custom_call.1} parent=43 // pred_check
          %p2530 = pneg %p120
        $region46: #{tpu_custom_call.1} parent=43 // pred_check_branch
          %2532 = sbr.rel (%p2530) target = $region48
        $region47: #{tpu_custom_call.1} parent=43 // pred_region
          %s2533 = sand.u32 %s105, 1
          %s2534 = scalar_lea.sflag [#allocation4], %s2533
          %s2535 = sand.u32 %s105, 1
          %s2536 = scalar_lea.vmem [#allocation3], %s2535
          %2537 = dma.done %s2534, 16
        $region48: #{tpu_custom_call.1} parent=43 // pred_fallthru
          _
      $region44: #{tpu_custom_call.1} parent=5 // pred_fallthru
        _
    $region6: #{tpu_custom_call.1} parent=1 // loop_footer
      %s15 = sadd.s32 1, %s11
    $region7: #{tpu_custom_call.1} parent=1 // loop_footer_branch
      %10 = sbr.rel target = $region3
    $region8: #{tpu_custom_call.1} parent=1 // loop_exit
      _
    %2538 = vsyncpa [#allocation4], 1
    %s2539 = scalar_lea.sflag [#allocation4], 1
    %2540 = vsyncpa %s2539, 1

</llo_original>
